<compile_context>
chip_gen: v7x
topology: tpu7x:2x2x1
jax: 0.10.0
libtpu: 0.0.40
codegen_flags: <defaults>
</compile_context>

<pallas_src>
import functools

import jax
import jax.numpy as jnp
from jax.experimental import pallas as pl
from jax.experimental.pallas import tpu as pltpu


# --------------------------------------------------------------------------
# helpers
# --------------------------------------------------------------------------
def _round_up(x, m):
    return (x + m - 1) // m * m


def _pair(v):
    if isinstance(v, (tuple, list)):
        assert len(v) == 2
        return int(v[0]), int(v[1])
    return int(v), int(v)


def _vmem_budget():
    """Per-generation tile budget and scoped VMEM limit.

    v5e/v6e have 128 MiB physical VMEM, v7x only 64 MiB; size tiles against
    the actual chip instead of a hardcoded guess and pass an explicit
    vmem_limit_bytes so the scoped default does not silently cap us.
    """
    try:
        cap = int(pltpu.get_tpu_info().vmem_capacity_bytes)
    except Exception:
        cap = 64 * 1024 * 1024                      # conservative (v7x) fallback
    limit = int(min(cap * 3 // 4, 96 * 1024 * 1024))
    budget = max(8 * 1024 * 1024, limit - 8 * 1024 * 1024)   # Mosaic scratch headroom
    return budget, limit


def _pick_tile(L_pad, cap_lanes, min_steps=1):
    """Largest multiple-of-128 divisor of L_pad that is <= cap_lanes and
    (best effort) leaves at least `min_steps` grid steps."""
    assert L_pad % 128 == 0
    m = L_pad // 128
    best = 128
    for d in range(1, m + 1):
        if m % d:
            continue
        tl = d * 128
        if tl <= cap_lanes and (L_pad // tl) >= min_steps:
            best = tl
    return best


# --------------------------------------------------------------------------
# stride==1 fast path: direct conv, per-tap GEMMs, no HBM im2col
# --------------------------------------------------------------------------
def _tap_gemm_kernel(x_ref, w_ref, o_ref, acc_ref, *, tap_offsets, tl, apply_relu):
    # x_ref:   (TCin, Win)        one spatial window of the flat padded image
    # w_ref:   (T, Cout_pad, TCin) per-tap matmul-ready weights (VMEM resident)
    # o_ref:   (Cout_pad, TL)     lane-dense output tile
    # acc_ref: (Cout_pad, TL)     f32 accumulator across the Cin-reduction axis
    k = pl.program_id(2)
    last_k = pl.num_programs(2) - 1

    @pl.when(k == 0)
    def _():
        acc_ref[...] = jnp.zeros_like(acc_ref)

    acc = acc_ref[...]
    for t, off in enumerate(tap_offsets):
        # Tap (kh, kw) is a contiguous, statically shifted slice of the flat
        # padded image (stride == 1), so no dynamic lane indexing is needed.
        xs = x_ref[:, off:off + tl]
        acc = acc + jnp.dot(w_ref[t], xs, preferred_element_type=jnp.float32)

    @pl.when(k != last_k)
    def _():
        acc_ref[...] = acc

    @pl.when(k == last_k)
    def _():
        r = jnp.maximum(acc, 0.0) if apply_relu else acc
        o_ref[...] = r.astype(o_ref.dtype)


def _conv_stride1(x, weight, *, ph, pw, dh, dw, relu, storage_dtype):
    N, Cin, H, W = x.shape
    Cout, _, KH, KW = weight.shape
    Hp, Wp = H + 2 * ph, W + 2 * pw
    Ho, Wo = Hp - dh * (KH - 1), Wp - dw * (KW - 1)
    assert Ho > 0 and Wo > 0, "basic_conv: empty output"

    s_dt = jnp.dtype(storage_dtype) if storage_dtype is not None else jnp.dtype(x.dtype)
    o_dt = x.dtype
    s_it, o_it = s_dt.itemsize, jnp.dtype(o_dt).itemsize

    T = KH * KW
    Cout_pad = _round_up(Cout, 8)
    # Flat output length in padded-width coordinates: computing the garbage
    # columns at the right edge of each row (sliced off later) makes every
    # tap a contiguous shift of the flattened padded image.
    Lc = Ho * Wp
    halo = (KH - 1) * dh * Wp + (KW - 1) * dw       # largest tap offset

    budget, vmem_limit = _vmem_budget()

    # ---- channel (reduction) tile: degenerate unless Cin is large ----------
    TCin = Cin
    win_est = _round_up(Lc, 128) + halo
    if Cin % 128 == 0 and 2 * Cin * win_est * s_it > budget // 3:
        TCin = 128
        for d in range(Cin - 128, 127, -128):
            if Cin % d == 0 and 2 * d * win_est * s_it <= budget // 3:
                TCin = d
                break
    Kc = Cin // TCin

    # ---- spatial window (multiple-of-128 lanes) -----------------------------
    per_lane = 2 * TCin * s_it + Cout_pad * (2 * o_it + 8)
    fixed = 2 * TCin * halo * s_it + 2 * T * Cout_pad * TCin * s_it
    cap = max(128, ((budget - fixed) // per_lane) // 128 * 128)
    cap = min(cap, max(128, (131072 // Cout_pad) // 128 * 128))  # bound live f32 acc
    TL = min(_round_up(Lc, 128), cap)
    if N == 1 and Lc > 128:
        # >= 2 spatial windows so both v7x TensorCores get work.
        TL = min(TL, _round_up(-(-Lc // 2), 128))
    S = -(-Lc // TL)                                  # number of spatial windows
    Win = TL + halo                                   # window length incl. tap halo

    # ---- operands: pad + overlapping windows (~1x input traffic) -----------
    x_pad = jnp.pad(x, ((0, 0), (0, 0), (ph, ph), (pw, pw)))
    x_flat = x_pad.reshape(N, Cin, Hp * Wp)
    lin_need = (S - 1) * TL + Win
    x_flat = jnp.pad(x_flat, ((0, 0), (0, 0), (0, lin_need - Hp * Wp)))
    # (N, S, Cin, Win): consecutive windows duplicate only the `halo` tail.
    x_win = jnp.stack([x_flat[:, :, i * TL: i * TL + Win] for i in range(S)],
                      axis=1).astype(s_dt)

    # w3[t, o, c] = weight[o, c, kh, kw],  t = kh*KW + kw ; Cout padded to 8.
    w3 = jnp.transpose(weight, (2, 3, 0, 1)).reshape(T, Cout, Cin)
    w3 = jnp.pad(w3, ((0, 0), (0, Cout_pad - Cout), (0, 0))).astype(s_dt)

    tap_offsets = tuple(kh * dh * Wp + kw * dw
                        for kh in range(KH) for kw in range(KW))
    kernel = functools.partial(_tap_gemm_kernel, tap_offsets=tap_offsets,
                               tl=TL, apply_relu=relu)

    out = pl.pallas_call(
        kernel,
        out_shape=jax.ShapeDtypeStruct((N, S, Cout_pad, TL), o_dt),
        grid_spec=pltpu.PrefetchScalarGridSpec(
            num_scalar_prefetch=0,
            grid=(N, S, Kc),
            in_specs=[
                # One spatial window per (n, s) and one channel slab per k.
                pl.BlockSpec((None, None, TCin, Win),
                             lambda n, s, k: (n, s, k, 0)),
                # Per-tap weights: constant across (n, s) -> VMEM resident.
                pl.BlockSpec((T, Cout_pad, TCin), lambda n, s, k: (0, 0, k)),
            ],
            out_specs=pl.BlockSpec((None, None, Cout_pad, TL),
                                   lambda n, s, k: (n, s, 0, 0)),
            scratch_shapes=[pltpu.VMEM((Cout_pad, TL), jnp.float32)],
        ),
        compiler_params=pltpu.CompilerParams(
            dimension_semantics=("parallel", "parallel", "arbitrary"),
            vmem_limit_bytes=vmem_limit),
    )(x_win, w3)

    # (N, S, Cout_pad, TL) -> (N, Cout, Ho, Wo).  The transpose is trivial
    # when S == 1 (the common case); for S > 1 it is a cheap output shuffle.
    out = jnp.transpose(out, (0, 2, 1, 3)).reshape(N, Cout_pad, S * TL)
    out = out[:, :Cout, :Ho * Wp].reshape(N, Cout, Ho, Wp)[:, :, :, :Wo]
    return out


# --------------------------------------------------------------------------
# stride>1 fallback: improved im2col GEMM
# --------------------------------------------------------------------------
def _im2col_gemm_kernel(p_ref, w_ref, o_ref, *, apply_relu):
    # p_ref: (Kd, TL) im2col patches tile; w_ref: (Cout_pad, Kd); o_ref: (Cout_pad, TL)
    acc = jnp.dot(w_ref[...], p_ref[...], preferred_element_type=jnp.float32)
    if apply_relu:
        acc = jnp.maximum(acc, 0.0)
    o_ref[...] = acc.astype(o_ref.dtype)


def _conv_general(x, weight, *, sh, sw, ph, pw, dh, dw, relu, storage_dtype):
    # TODO(synk): strided convs still go through an HBM-materialized im2col;
    # only the stride==1 path avoids it.
    N, Cin, H, W = x.shape
    Cout, _, KH, KW = weight.shape
    Hp, Wp = H + 2 * ph, W + 2 * pw
    Ho = (Hp - dh * (KH - 1) - 1) // sh + 1
    Wo = (Wp - dw * (KW - 1) - 1) // sw + 1
    assert Ho > 0 and Wo > 0, "basic_conv: empty output"

    s_dt = jnp.dtype(storage_dtype) if storage_dtype is not None else jnp.dtype(x.dtype)
    o_dt = x.dtype
    s_it, o_it = s_dt.itemsize, jnp.dtype(o_dt).itemsize

    T = KH * KW
    Kd = T * Cin
    Cout_pad = _round_up(Cout, 8)
    budget, vmem_limit = _vmem_budget()

    x_pad = jnp.pad(x, ((0, 0), (0, 0), (ph, ph), (pw, pw)))
    taps = [x_pad[:, :, kh * dh: kh * dh + (Ho - 1) * sh + 1: sh,
                        kw * dw: kw * dw + (Wo - 1) * sw + 1: sw]
            for kh in range(KH) for kw in range(KW)]
    # (Kd, N*Ho*Wo): fold the batch into the flat spatial axis so the GEMM
    # minor dim stays lane-dense even when Ho*Wo is small, then pad to 128.
    A = jnp.transpose(jnp.stack(taps, axis=0), (0, 2, 1, 3, 4))
    NL = N * Ho * Wo
    NL_pad = _round_up(NL, 128)
    patches = jnp.pad(A.reshape(Kd, NL), ((0, 0), (0, NL_pad - NL))).astype(s_dt)

    # w2[o, t*Cin + c] = weight[o, c, kh, kw]; Cout padded to a multiple of 8.
    w2 = jnp.transpose(weight, (0, 2, 3, 1)).reshape(Cout, Kd)
    w2 = jnp.pad(w2, ((0, Cout_pad - Cout), (0, 0))).astype(s_dt)

    fixed = 2 * Cout_pad * Kd * s_it
    per_lane = 2 * Kd * s_it + Cout_pad * (2 * o_it + 4)
    cap = max(128, ((budget - fixed) // per_lane) // 128 * 128)
    cap = min(cap, max(128, (131072 // Cout_pad) // 128 * 128))
    TL = _pick_tile(NL_pad, cap, min_steps=2)

    kernel = functools.partial(_im2col_gemm_kernel, apply_relu=relu)
    out = pl.pallas_call(
        kernel,
        out_shape=jax.ShapeDtypeStruct((Cout_pad, NL_pad), o_dt),
        grid_spec=pltpu.PrefetchScalarGridSpec(
            num_scalar_prefetch=0,
            grid=(NL_pad // TL,),
            in_specs=[
                pl.BlockSpec((Kd, TL), lambda s: (0, s)),
                pl.BlockSpec((Cout_pad, Kd), lambda s: (0, 0)),   # VMEM resident
            ],
            out_specs=pl.BlockSpec((Cout_pad, TL), lambda s: (0, s)),
        ),
        compiler_params=pltpu.CompilerParams(
            dimension_semantics=("parallel",),
            vmem_limit_bytes=vmem_limit),
    )(patches, w2)

    out = out[:Cout, :NL].reshape(Cout, N, Ho, Wo)
    return jnp.transpose(out, (1, 0, 2, 3))


# --------------------------------------------------------------------------
# public entry point: BasicConv.forward
# --------------------------------------------------------------------------
def basic_conv(x, weight, *, stride=1, padding=0, dilation=1, groups=1,
               relu=True, bias=None, storage_dtype=None):
    """Forward pass of BasicConv: Conv2d(..., bias=False) + optional ReLU.

    storage_dtype: optional narrower dtype (e.g. jnp.bfloat16) for the HBM
    operands; the MXU accumulate and the ReLU epilogue stay in float32.
    """
    N, Cin, H, W = x.shape
    Cout, Cin_w, KH, KW = weight.shape
    assert groups == 1, "basic_conv: groups != 1 is not supported"
    assert Cin == Cin_w, "basic_conv: channel mismatch between x and weight"
    # TODO(synk): conv bias could be added in the epilogue; module default is bias=False.
    assert bias is None, "basic_conv: bias is not supported"

    sh, sw = _pair(stride)
    ph, pw = _pair(padding)
    dh, dw = _pair(dilation)

    if sh == 1 and sw == 1:
        return _conv_stride1(x, weight, ph=ph, pw=pw, dh=dh, dw=dw,
                             relu=relu, storage_dtype=storage_dtype)
    return _conv_general(x, weight, sh=sh, sw=sw, ph=ph, pw=pw, dh=dh, dw=dw,
                         relu=relu, storage_dtype=storage_dtype)


# --------------------------------------------------------------------------
# self-test
# --------------------------------------------------------------------------
if __name__ == "__main__":
    key = jax.random.PRNGKey(0)
    k_x, k_w, k_x2 = jax.random.split(key, 3)

    # BasicConv(in_planes=4, out_planes=8, kernel_size=3, padding=1, relu=True)
    N, Cin, H, W = 2, 4, 16, 16
    Cout, KH, KW = 8, 3, 3
    x = jax.random.normal(k_x, (N, Cin, H, W), dtype=jnp.float32)
    weight = (jax.random.normal(k_w, (Cout, Cin, KH, KW), dtype=jnp.float32)
              * (1.0 / (Cin * KH * KW) ** 0.5))

    def conv_ref(xx, ww, strides, relu_flag):
        r = jax.lax.conv_general_dilated(
            xx, ww, strides, ((1, 1), (1, 1)),
            dimension_numbers=("NCHW", "OIHW", "NCHW"))
        return jnp.maximum(r, 0.0) if relu_flag else r

    # 1) Primary: stride=1, padding=1, relu=True -> direct-conv fast path.
    out = jax.block_until_ready(basic_conv(x, weight, padding=1, relu=True))
    ref = conv_ref(x, weight, (1, 1), True)
    assert out.shape == (N, Cout, H, W)
    assert jnp.allclose(out, ref, atol=1e-4, rtol=1e-4)

    # 2) stride=2, no ReLU -> im2col fallback (batch folded into lanes).
    out2 = jax.block_until_ready(basic_conv(x, weight, stride=2, padding=1, relu=False))
    ref2 = conv_ref(x, weight, (2, 2), False)
    assert out2.shape == ref2.shape
    assert jnp.allclose(out2, ref2, atol=1e-4, rtol=1e-4)

    # 3) bf16 operand storage (halves HBM traffic; f32 MXU accumulate).
    out3 = jax.block_until_ready(
        basic_conv(x, weight, padding=1, relu=True, storage_dtype=jnp.bfloat16))
    xb = x.astype(jnp.bfloat16).astype(jnp.float32)
    wb = weight.astype(jnp.bfloat16).astype(jnp.float32)
    ref3 = conv_ref(xb, wb, (1, 1), True)
    assert jnp.allclose(out3, ref3, atol=1e-2, rtol=1e-2)

    # 4) N=1 -> forces >=2 spatial windows (keeps both v7x TensorCores busy).
    x4 = jax.random.normal(k_x2, (1, Cin, 24, 24), dtype=jnp.float32)
    out4 = jax.block_until_ready(basic_conv(x4, weight, padding=1, relu=True))
    ref4 = conv_ref(x4, weight, (1, 1), True)
    assert out4.shape == ref4.shape
    assert jnp.allclose(out4, ref4, atol=1e-4, rtol=1e-4)

    print("KERNEL_OK")
</pallas_src>

<mosaic_0001>
module attributes {stable_mosaic.version = 11 : i64} {
  func.func @_tap_gemm_kernel(%arg0: i32, %arg1: i32, %arg2: i32, %arg3: memref<1x1x4x422xf32, #tpu.memory_space<vmem>>, %arg4: memref<9x8x4xf32, #tpu.memory_space<vmem>>, %arg5: memref<1x1x8x384xf32, #tpu.memory_space<vmem>>, %arg6: memref<8x384xf32, #tpu.memory_space<vmem>>) attributes {dimension_semantics = [#tpu.dimension_semantics<parallel>, #tpu.dimension_semantics<parallel>, #tpu.dimension_semantics<arbitrary>], iteration_bounds = array<i64: 2, 1, 1>, scalar_prefetch = 0 : i64, scratch_operands = 1 : i64, tpu.core_type = #tpu.core_type<tc>, window_params = [{transform_indices = @transform_0, window_bounds = array<i64: 1, 1, 4, 422>}, {transform_indices = @transform_1, window_bounds = array<i64: 9, 8, 4>}, {transform_indices = @transform_2, window_bounds = array<i64: 1, 1, 8, 384>}]} {
    %c0_i32 = arith.constant 0 : i32
    %0 = arith.cmpi eq, %arg2, %c0_i32 : i32
    %1 = arith.extui %0 : i1 to i32
    %c0_i32_0 = arith.constant 0 : i32
    %2 = arith.cmpi ne, %1, %c0_i32_0 : i32
    scf.if %2 {
      %cst_63 = arith.constant 0.000000e+00 : f32
      %64 = vector.broadcast %cst_63 : f32 to vector<8x384xf32>
      %c0_64 = arith.constant 0 : index
      %c0_65 = arith.constant 0 : index
      %65 = vector.load %arg6[%c0_64, %c0_65] : memref<8x384xf32, #tpu.memory_space<vmem>>, vector<8x384xf32>
      tpu.vector_store %arg6[%c0_64, %c0_65], %64 {strides = array<i32>} : memref<8x384xf32, #tpu.memory_space<vmem>>, vector<8x384xf32>,
    } else {
    }
    %c0 = arith.constant 0 : index
    %c0_1 = arith.constant 0 : index
    %3 = vector.load %arg6[%c0, %c0_1] : memref<8x384xf32, #tpu.memory_space<vmem>>, vector<8x384xf32>
    %c0_2 = arith.constant 0 : index
    %c0_3 = arith.constant 0 : index
    %c0_4 = arith.constant 0 : index
    %c0_5 = arith.constant 0 : index
    %4 = vector.load %arg3[%c0_2, %c0_3, %c0_4, %c0_5] : memref<1x1x4x422xf32, #tpu.memory_space<vmem>>, vector<1x1x4x384xf32>
    %5 = vector.shape_cast %4 : vector<1x1x4x384xf32> to vector<4x384xf32>
    %c0_6 = arith.constant 0 : index
    %c0_7 = arith.constant 0 : index
    %c0_8 = arith.constant 0 : index
    %6 = vector.load %arg4[%c0_6, %c0_7, %c0_8] : memref<9x8x4xf32, #tpu.memory_space<vmem>>, vector<1x8x4xf32>
    %7 = vector.shape_cast %6 : vector<1x8x4xf32> to vector<8x4xf32>
    %cst = arith.constant dense<0.000000e+00> : vector<8x384xf32>
    %8 = tpu.matmul %7, %5, %cst {dimension_numbers = #tpu.dot_dimension_numbers<[1], [0], [0], [1], [0, 0, 1, 1], [], []>} : vector<8x4xf32>, vector<4x384xf32>, vector<8x384xf32> -> vector<8x384xf32>
    %9 = arith.addf %3, %8 : vector<8x384xf32>
    %c0_9 = arith.constant 0 : index
    %c0_10 = arith.constant 0 : index
    %c0_11 = arith.constant 0 : index
    %c1 = arith.constant 1 : index
    %10 = vector.load %arg3[%c0_9, %c0_10, %c0_11, %c1] : memref<1x1x4x422xf32, #tpu.memory_space<vmem>>, vector<1x1x4x384xf32>
    %11 = vector.shape_cast %10 : vector<1x1x4x384xf32> to vector<4x384xf32>
    %c1_12 = arith.constant 1 : index
    %c0_13 = arith.constant 0 : index
    %c0_14 = arith.constant 0 : index
    %12 = vector.load %arg4[%c1_12, %c0_13, %c0_14] : memref<9x8x4xf32, #tpu.memory_space<vmem>>, vector<1x8x4xf32>
    %13 = vector.shape_cast %12 : vector<1x8x4xf32> to vector<8x4xf32>
    %cst_15 = arith.constant dense<0.000000e+00> : vector<8x384xf32>
    %14 = tpu.matmul %13, %11, %cst_15 {dimension_numbers = #tpu.dot_dimension_numbers<[1], [0], [0], [1], [0, 0, 1, 1], [], []>} : vector<8x4xf32>, vector<4x384xf32>, vector<8x384xf32> -> vector<8x384xf32>
    %15 = arith.addf %9, %14 : vector<8x384xf32>
    %c0_16 = arith.constant 0 : index
    %c0_17 = arith.constant 0 : index
    %c0_18 = arith.constant 0 : index
    %c2 = arith.constant 2 : index
    %16 = vector.load %arg3[%c0_16, %c0_17, %c0_18, %c2] : memref<1x1x4x422xf32, #tpu.memory_space<vmem>>, vector<1x1x4x384xf32>
    %17 = vector.shape_cast %16 : vector<1x1x4x384xf32> to vector<4x384xf32>
    %c2_19 = arith.constant 2 : index
    %c0_20 = arith.constant 0 : index
    %c0_21 = arith.constant 0 : index
    %18 = vector.load %arg4[%c2_19, %c0_20, %c0_21] : memref<9x8x4xf32, #tpu.memory_space<vmem>>, vector<1x8x4xf32>
    %19 = vector.shape_cast %18 : vector<1x8x4xf32> to vector<8x4xf32>
    %cst_22 = arith.constant dense<0.000000e+00> : vector<8x384xf32>
    %20 = tpu.matmul %19, %17, %cst_22 {dimension_numbers = #tpu.dot_dimension_numbers<[1], [0], [0], [1], [0, 0, 1, 1], [], []>} : vector<8x4xf32>, vector<4x384xf32>, vector<8x384xf32> -> vector<8x384xf32>
    %21 = arith.addf %15, %20 : vector<8x384xf32>
    %c0_23 = arith.constant 0 : index
    %c0_24 = arith.constant 0 : index
    %c0_25 = arith.constant 0 : index
    %c18 = arith.constant 18 : index
    %22 = vector.load %arg3[%c0_23, %c0_24, %c0_25, %c18] : memref<1x1x4x422xf32, #tpu.memory_space<vmem>>, vector<1x1x4x384xf32>
    %23 = vector.shape_cast %22 : vector<1x1x4x384xf32> to vector<4x384xf32>
    %c3 = arith.constant 3 : index
    %c0_26 = arith.constant 0 : index
    %c0_27 = arith.constant 0 : index
    %24 = vector.load %arg4[%c3, %c0_26, %c0_27] : memref<9x8x4xf32, #tpu.memory_space<vmem>>, vector<1x8x4xf32>
    %25 = vector.shape_cast %24 : vector<1x8x4xf32> to vector<8x4xf32>
    %cst_28 = arith.constant dense<0.000000e+00> : vector<8x384xf32>
    %26 = tpu.matmul %25, %23, %cst_28 {dimension_numbers = #tpu.dot_dimension_numbers<[1], [0], [0], [1], [0, 0, 1, 1], [], []>} : vector<8x4xf32>, vector<4x384xf32>, vector<8x384xf32> -> vector<8x384xf32>
    %27 = arith.addf %21, %26 : vector<8x384xf32>
    %c0_29 = arith.constant 0 : index
    %c0_30 = arith.constant 0 : index
    %c0_31 = arith.constant 0 : index
    %c19 = arith.constant 19 : index
    %28 = vector.load %arg3[%c0_29, %c0_30, %c0_31, %c19] : memref<1x1x4x422xf32, #tpu.memory_space<vmem>>, vector<1x1x4x384xf32>
    %29 = vector.shape_cast %28 : vector<1x1x4x384xf32> to vector<4x384xf32>
    %c4 = arith.constant 4 : index
    %c0_32 = arith.constant 0 : index
    %c0_33 = arith.constant 0 : index
    %30 = vector.load %arg4[%c4, %c0_32, %c0_33] : memref<9x8x4xf32, #tpu.memory_space<vmem>>, vector<1x8x4xf32>
    %31 = vector.shape_cast %30 : vector<1x8x4xf32> to vector<8x4xf32>
    %cst_34 = arith.constant dense<0.000000e+00> : vector<8x384xf32>
    %32 = tpu.matmul %31, %29, %cst_34 {dimension_numbers = #tpu.dot_dimension_numbers<[1], [0], [0], [1], [0, 0, 1, 1], [], []>} : vector<8x4xf32>, vector<4x384xf32>, vector<8x384xf32> -> vector<8x384xf32>
    %33 = arith.addf %27, %32 : vector<8x384xf32>
    %c0_35 = arith.constant 0 : index
    %c0_36 = arith.constant 0 : index
    %c0_37 = arith.constant 0 : index
    %c20 = arith.constant 20 : index
    %34 = vector.load %arg3[%c0_35, %c0_36, %c0_37, %c20] : memref<1x1x4x422xf32, #tpu.memory_space<vmem>>, vector<1x1x4x384xf32>
    %35 = vector.shape_cast %34 : vector<1x1x4x384xf32> to vector<4x384xf32>
    %c5 = arith.constant 5 : index
    %c0_38 = arith.constant 0 : index
    %c0_39 = arith.constant 0 : index
    %36 = vector.load %arg4[%c5, %c0_38, %c0_39] : memref<9x8x4xf32, #tpu.memory_space<vmem>>, vector<1x8x4xf32>
    %37 = vector.shape_cast %36 : vector<1x8x4xf32> to vector<8x4xf32>
    %cst_40 = arith.constant dense<0.000000e+00> : vector<8x384xf32>
    %38 = tpu.matmul %37, %35, %cst_40 {dimension_numbers = #tpu.dot_dimension_numbers<[1], [0], [0], [1], [0, 0, 1, 1], [], []>} : vector<8x4xf32>, vector<4x384xf32>, vector<8x384xf32> -> vector<8x384xf32>
    %39 = arith.addf %33, %38 : vector<8x384xf32>
    %c0_41 = arith.constant 0 : index
    %c0_42 = arith.constant 0 : index
    %c0_43 = arith.constant 0 : index
    %c36 = arith.constant 36 : index
    %40 = vector.load %arg3[%c0_41, %c0_42, %c0_43, %c36] : memref<1x1x4x422xf32, #tpu.memory_space<vmem>>, vector<1x1x4x384xf32>
    %41 = vector.shape_cast %40 : vector<1x1x4x384xf32> to vector<4x384xf32>
    %c6 = arith.constant 6 : index
    %c0_44 = arith.constant 0 : index
    %c0_45 = arith.constant 0 : index
    %42 = vector.load %arg4[%c6, %c0_44, %c0_45] : memref<9x8x4xf32, #tpu.memory_space<vmem>>, vector<1x8x4xf32>
    %43 = vector.shape_cast %42 : vector<1x8x4xf32> to vector<8x4xf32>
    %cst_46 = arith.constant dense<0.000000e+00> : vector<8x384xf32>
    %44 = tpu.matmul %43, %41, %cst_46 {dimension_numbers = #tpu.dot_dimension_numbers<[1], [0], [0], [1], [0, 0, 1, 1], [], []>} : vector<8x4xf32>, vector<4x384xf32>, vector<8x384xf32> -> vector<8x384xf32>
    %45 = arith.addf %39, %44 : vector<8x384xf32>
    %c0_47 = arith.constant 0 : index
    %c0_48 = arith.constant 0 : index
    %c0_49 = arith.constant 0 : index
    %c37 = arith.constant 37 : index
    %46 = vector.load %arg3[%c0_47, %c0_48, %c0_49, %c37] : memref<1x1x4x422xf32, #tpu.memory_space<vmem>>, vector<1x1x4x384xf32>
    %47 = vector.shape_cast %46 : vector<1x1x4x384xf32> to vector<4x384xf32>
    %c7 = arith.constant 7 : index
    %c0_50 = arith.constant 0 : index
    %c0_51 = arith.constant 0 : index
    %48 = vector.load %arg4[%c7, %c0_50, %c0_51] : memref<9x8x4xf32, #tpu.memory_space<vmem>>, vector<1x8x4xf32>
    %49 = vector.shape_cast %48 : vector<1x8x4xf32> to vector<8x4xf32>
    %cst_52 = arith.constant dense<0.000000e+00> : vector<8x384xf32>
    %50 = tpu.matmul %49, %47, %cst_52 {dimension_numbers = #tpu.dot_dimension_numbers<[1], [0], [0], [1], [0, 0, 1, 1], [], []>} : vector<8x4xf32>, vector<4x384xf32>, vector<8x384xf32> -> vector<8x384xf32>
    %51 = arith.addf %45, %50 : vector<8x384xf32>
    %c0_53 = arith.constant 0 : index
    %c0_54 = arith.constant 0 : index
    %c0_55 = arith.constant 0 : index
    %c38 = arith.constant 38 : index
    %52 = vector.load %arg3[%c0_53, %c0_54, %c0_55, %c38] : memref<1x1x4x422xf32, #tpu.memory_space<vmem>>, vector<1x1x4x384xf32>
    %53 = vector.shape_cast %52 : vector<1x1x4x384xf32> to vector<4x384xf32>
    %c8 = arith.constant 8 : index
    %c0_56 = arith.constant 0 : index
    %c0_57 = arith.constant 0 : index
    %54 = vector.load %arg4[%c8, %c0_56, %c0_57] : memref<9x8x4xf32, #tpu.memory_space<vmem>>, vector<1x8x4xf32>
    %55 = vector.shape_cast %54 : vector<1x8x4xf32> to vector<8x4xf32>
    %cst_58 = arith.constant dense<0.000000e+00> : vector<8x384xf32>
    %56 = tpu.matmul %55, %53, %cst_58 {dimension_numbers = #tpu.dot_dimension_numbers<[1], [0], [0], [1], [0, 0, 1, 1], [], []>} : vector<8x4xf32>, vector<4x384xf32>, vector<8x384xf32> -> vector<8x384xf32>
    %57 = arith.addf %51, %56 : vector<8x384xf32>
    %c0_i32_59 = arith.constant 0 : i32
    %58 = arith.cmpi ne, %arg2, %c0_i32_59 : i32
    %59 = arith.extui %58 : i1 to i32
    %c0_i32_60 = arith.constant 0 : i32
    %60 = arith.cmpi ne, %59, %c0_i32_60 : i32
    scf.if %60 {
      %c0_63 = arith.constant 0 : index
      %c0_64 = arith.constant 0 : index
      %64 = vector.load %arg6[%c0_63, %c0_64] : memref<8x384xf32, #tpu.memory_space<vmem>>, vector<8x384xf32>
      tpu.vector_store %arg6[%c0_63, %c0_64], %57 {strides = array<i32>} : memref<8x384xf32, #tpu.memory_space<vmem>>, vector<8x384xf32>,
    } else {
    }
    %c0_i32_61 = arith.constant 0 : i32
    %61 = arith.cmpi eq, %arg2, %c0_i32_61 : i32
    %62 = arith.extui %61 : i1 to i32
    %c0_i32_62 = arith.constant 0 : i32
    %63 = arith.cmpi ne, %62, %c0_i32_62 : i32
    scf.if %63 {
      %cst_63 = arith.constant 0.000000e+00 : f32
      %64 = vector.broadcast %cst_63 : f32 to vector<8x384xf32>
      %65 = arith.maximumf %57, %64 : vector<8x384xf32>
      %c0_64 = arith.constant 0 : index
      %c0_65 = arith.constant 0 : index
      %c0_66 = arith.constant 0 : index
      %c0_67 = arith.constant 0 : index
      %66 = vector.load %arg5[%c0_64, %c0_65, %c0_66, %c0_67] : memref<1x1x8x384xf32, #tpu.memory_space<vmem>>, vector<1x1x8x384xf32>
      %67 = vector.shape_cast %66 : vector<1x1x8x384xf32> to vector<8x384xf32>
      %68 = vector.shape_cast %65 : vector<8x384xf32> to vector<1x1x8x384xf32>
      tpu.vector_store %arg5[%c0_64, %c0_65, %c0_66, %c0_67], %68 {strides = array<i32>} : memref<1x1x8x384xf32, #tpu.memory_space<vmem>>, vector<1x1x8x384xf32>,
    } else {
    }
    return
  }
  func.func @transform_0(%arg0: i32, %arg1: i32, %arg2: i32) -> (i32, i32, i32, i32) {
    %c0_i32 = arith.constant 0 : i32
    %c0_i32_0 = arith.constant 0 : i32
    return %arg0, %arg1, %arg2, %c0_i32 : i32, i32, i32, i32
  }
  func.func @transform_1(%arg0: i32, %arg1: i32, %arg2: i32) -> (i32, i32, i32) {
    %c0_i32 = arith.constant 0 : i32
    %c0_i32_0 = arith.constant 0 : i32
    %c0_i32_1 = arith.constant 0 : i32
    return %c0_i32, %c0_i32_0, %arg2 : i32, i32, i32
  }
  func.func @transform_2(%arg0: i32, %arg1: i32, %arg2: i32) -> (i32, i32, i32, i32) {
    %c0_i32 = arith.constant 0 : i32
    %c0_i32_0 = arith.constant 0 : i32
    %c0_i32_1 = arith.constant 0 : i32
    return %arg0, %arg1, %c0_i32, %c0_i32_0 : i32, i32, i32, i32
  }
}

</mosaic_0001>

<llo_original>
// kernel: tpu_custom_call.1
$region0: #{tpu_custom_call.1}
  #allocation0 [shape = 'u32[]', space=smem, size = 0x4, offset = 0x4, fixed_abs, tag = 'smem constant byte address 0x4 - core index']
  #allocation1 [shape = 'u32[144,128]{1,0:T(1,128)}', space=vmem, size = 0x12000, scoped, tag = 'internal scratch']
  #allocation2 [shape = 'f32[8,384]{1,0:T(8,128)}', space=vmem, size = 0x3000, scoped, tag = 'scratch operand']
  %s0 = inlined_call_operand.vmem [shape: f32[2,1,4,422], index: 0, kind: input, shape index: {}]
  %s1 = inlined_call_operand.vmem [shape: f32[9,8,4], index: 1, kind: input, shape index: {}]
  %s2 = inlined_call_operand.hbm [shape: f32[2,1,8,384], index: 2, kind: output, shape index: {}]
  %s3 = sld [smem:[#allocation0]]
  $region53: #{tpu_custom_call.1} parent=0
    _
  %s5 = ssub.s32 1, %s3
  %s6 = scalar_select 0, %s5, %s3
  $region1: #{tpu_custom_call.1} parent=0
    #allocation3 [shape = 'u8[24576]{0}', space=vmem, size = 0x6000, scoped, tag = 'output window, operand 0']
    #allocation4 [shape = 's32[2]{0}', space=sflag, size = 0x8, scoped, tag = 'scoped memory for tpu_custom_call.1']
    %7 = vsyncpa [#allocation4], 0
    %s8 = scalar_lea.sflag [#allocation4], 1
    %9 = vsyncpa %s8, 0
    loop: start=0, step=1, limit=4
    $region2: #{tpu_custom_call.1} parent=1 // loop_pre_header
      _
    $region3: #{tpu_custom_call.1} parent=1 // loop_header
      %s11 = sphi 0, %s15
      %p12 = scmp.ge.s32.totalorder %s11, 4
      %s18 = sphi 0, %s37
      %s19 = sphi 0, %s33
      %s20 = sphi 0, %s29
      %s21 = sphi 0, %s18
      %s22 = sphi 0, %s19
      %s23 = sphi 0, %s20
      %s24 = sphi 0, %s21
      %s25 = sphi 0, %s22
      %s26 = sphi 0, %s23
      %s44 = sphi 0, %s46
      %s47 = sphi 0, %s44
      %s48 = sphi 0, %s47
      %s64 = sphi 0, %s48
      %s70 = sphi 0, %s72
      %s73 = sphi 0, %s70
      %s74 = sphi 0, %s73
      %s90 = sphi 0, %s74
      %s98 = sphi 0, %s100
      %s101 = sphi 0, %s98
      %s102 = sphi 0, %s101
      %s118 = sphi 0, %s102
    $region4: #{tpu_custom_call.1} parent=1 // loop_header_branch
      %14 = sbr.rel (%p12) target = $region8
    $region5: #{tpu_custom_call.1} parent=1 // loop_body
      %s16 = ssub.s32 %s11, 1
      %s17 = ssub.s32 %s11, 2
      %s27 = sadd.s32 1, %s20
      %p28 = scmp.ge.s32.totalorder %s27, 1
      %s29 = scalar_select %p28, 0, %s27
      %s30 = sadd.s32 1, %s19
      %s31 = scalar_select %p28, %s30, %s19
      %p32 = scmp.ge.s32.totalorder %s31, 1
      %s33 = scalar_select %p32, 0, %s31
      %s34 = sadd.s32 1, %s18
      %s35 = scalar_select %p32, %s34, %s18
      %p36 = scmp.ge.s32.totalorder %s35, 2
      %s37 = scalar_select %p36, 0, %s35
      %s38 = ssub.s32 %s18, %s37
      %s39 = ssub.s32 %s19, %s33
      %s40 = sor.u32 %s38, %s39
      %s41 = ssub.s32 %s20, %s29
      %s42 = sor.u32 %s40, %s41
      %p43 = scmp.eq.s32.totalorder %s42, 0
      %s45 = sadd.s32 %s44, 1
      %s46 = scalar_select %p43, %s44, %s45
      %p49 = pneg %p43
      %p50 = scmp.eq.s32.totalorder %s11, 1
      %p51 = por %p49, %p50
      %p52 = scmp.ne.s32.totalorder %s44, %s47
      %p53 = scmp.eq.s32.totalorder %s11, 0
      %p54 = por %p52, %p53
      %p55 = scmp.ne.s32.totalorder %s44, %s47
      %p56 = scmp.eq.s32.totalorder %s16, 1
      %p57 = por %p55, %p56
      %p58 = scmp.ne.s32.totalorder %s47, %s48
      %p59 = scmp.eq.s32.totalorder %s16, 0
      %p60 = por %p58, %p59
      %p61 = scmp.ne.s32.totalorder %s47, %s48
      %p62 = scmp.eq.s32.totalorder %s17, 1
      %p63 = por %p61, %p62
      %p65 = scmp.ne.s32.totalorder %s48, %s64
      %p66 = scmp.eq.s32.totalorder %s17, 0
      %p67 = por %p65, %p66
      %s68 = ssub.s32 %s20, %s29
      %p69 = scmp.eq.s32.totalorder %s68, 0
      %s71 = sadd.s32 %s70, 1
      %s72 = scalar_select %p69, %s70, %s71
      %p75 = pneg %p69
      %p76 = scmp.eq.s32.totalorder %s11, 1
      %p77 = por %p75, %p76
      %p78 = scmp.ne.s32.totalorder %s70, %s73
      %p79 = scmp.eq.s32.totalorder %s11, 0
      %p80 = por %p78, %p79
      %p81 = scmp.ne.s32.totalorder %s70, %s73
      %p82 = scmp.eq.s32.totalorder %s16, 1
      %p83 = por %p81, %p82
      %p84 = scmp.ne.s32.totalorder %s73, %s74
      %p85 = scmp.eq.s32.totalorder %s16, 0
      %p86 = por %p84, %p85
      %p87 = scmp.ne.s32.totalorder %s73, %s74
      %p88 = scmp.eq.s32.totalorder %s17, 1
      %p89 = por %p87, %p88
      %p91 = scmp.ne.s32.totalorder %s74, %s90
      %p92 = scmp.eq.s32.totalorder %s17, 0
      %p93 = por %p91, %p92
      %s94 = ssub.s32 %s18, %s37
      %s95 = ssub.s32 %s19, %s33
      %s96 = sor.u32 %s94, %s95
      %p97 = scmp.eq.s32.totalorder %s96, 0
      %s99 = sadd.s32 %s98, 1
      %s100 = scalar_select %p97, %s98, %s99
      %p103 = pneg %p97
      %p104 = scmp.eq.s32.totalorder %s11, 1
      %p105 = por %p103, %p104
      %p106 = scmp.ne.s32.totalorder %s98, %s101
      %p107 = scmp.eq.s32.totalorder %s11, 0
      %p108 = por %p106, %p107
      %p109 = scmp.ne.s32.totalorder %s98, %s101
      %p110 = scmp.eq.s32.totalorder %s16, 1
      %p111 = por %p109, %p110
      %p112 = scmp.ne.s32.totalorder %s101, %s102
      %p113 = scmp.eq.s32.totalorder %s16, 0
      %p114 = por %p112, %p113
      %p115 = scmp.ne.s32.totalorder %s101, %s102
      %p116 = scmp.eq.s32.totalorder %s17, 1
      %p117 = por %p115, %p116
      %p119 = scmp.ne.s32.totalorder %s102, %s118
      %p120 = scmp.eq.s32.totalorder %s17, 0
      %p121 = por %p119, %p120
      %p122 = scmp.le.s32.totalorder 1, %s11
      %p123 = scmp.lt.s32.totalorder %s11, 3
      %p124 = pnand %p122, %p123
      %p125 = pneg %p124
      // Predicated region
      $region9: #{tpu_custom_call.1} parent=5 // pred_check
        _
      $region10: #{tpu_custom_call.1} parent=5 // pred_check_branch
        %127 = sbr.rel (%p124) target = $region12
      $region11: #{tpu_custom_call.1} parent=5 // pred_region
        %s128 = ssub.s32 %s11, 1
        // Predicated region
        $region13: #{tpu_custom_call.1} parent=11 // pred_check
          %p129 = pneg %p86
        $region14: #{tpu_custom_call.1} parent=11 // pred_check_branch
          %131 = sbr.rel (%p129) target = $region16
        $region15: #{tpu_custom_call.1} parent=11 // pred_region
          %p132 = scmp.lt.s32.totalorder %s23, 0
          %s133 = scalar_select %p132, %s23, 0
          %s134 = smul.addr %s133, 8
          %s135 = scalar_lea.vmem %s1, %s134
        $region16: #{tpu_custom_call.1} parent=11 // pred_fallthru
          _
      $region12: #{tpu_custom_call.1} parent=5 // pred_fallthru
        _
      %p136 = scmp.lt.s32.totalorder %s11, 2
      // Predicated region
      $region17: #{tpu_custom_call.1} parent=5 // pred_check
        %p137 = pneg %p136
      $region18: #{tpu_custom_call.1} parent=5 // pred_check_branch
        %139 = sbr.rel (%p137) target = $region20
      $region19: #{tpu_custom_call.1} parent=5 // pred_region
        // Predicated region
        $region21: #{tpu_custom_call.1} parent=19 // pred_check
          %p140 = pneg %p54
        $region22: #{tpu_custom_call.1} parent=19 // pred_check_branch
          %142 = sbr.rel (%p140) target = $region24
        $region23: #{tpu_custom_call.1} parent=19 // pred_region
          %p143 = scmp.lt.s32.totalorder %s18, 1
          %s144 = scalar_select %p143, %s18, 1
          %p145 = scmp.lt.s32.totalorder %s19, 0
          %s146 = scalar_select %p145, %s19, 0
          %p147 = scmp.lt.s32.totalorder %s20, 0
          %s148 = scalar_select %p147, %s20, 0
          %s149 = smul.addr %s148, 4
          %s150 = smul.addr %s146, 4
          %s151 = sadd.s32 %s149, %s150
          %s152 = smul.addr %s144, 4
          %s153 = sadd.s32 %s151, %s152
          %s154 = smul.addr %s153, 4
          %s155 = scalar_lea.vmem %s0, %s154
        $region24: #{tpu_custom_call.1} parent=19 // pred_fallthru
          _
      $region20: #{tpu_custom_call.1} parent=5 // pred_fallthru
        _
      %p156 = scmp.le.s32.totalorder 1, %s11
      %p157 = scmp.lt.s32.totalorder %s11, 3
      %p158 = pnand %p156, %p157
      %p159 = pneg %p158
      // Predicated region
      $region25: #{tpu_custom_call.1} parent=5 // pred_check
        _
      $region26: #{tpu_custom_call.1} parent=5 // pred_check_branch
        %161 = sbr.rel (%p158) target = $region28
      $region27: #{tpu_custom_call.1} parent=5 // pred_region
        %s162 = ssub.s32 %s11, 1
        %p163 = scmp.lt.s32.totalorder %s21, 1
        %s164 = scalar_select %p163, %s21, 1
        %p165 = scmp.lt.s32.totalorder %s22, 0
        %s166 = scalar_select %p165, %s22, 0
        %p167 = scmp.lt.s32.totalorder %s23, 0
        %s168 = scalar_select %p167, %s23, 0
        %s169 = smul.addr %s168, 4
        %s170 = smul.addr %s166, 4
        %s171 = sadd.s32 %s169, %s170
        %s172 = smul.addr %s164, 4
        %s173 = sadd.s32 %s171, %s172
        %s174 = smul.addr %s173, 4
        %s175 = scalar_lea.vmem %s0, %s174
        %p176 = pneg %p60
        %p177 = pneg %p57
        %p178 = scmp.lt.s32.totalorder %s23, 0
        %s179 = scalar_select %p178, %s23, 0
        %s180 = smul.addr %s179, 8
        %s181 = scalar_lea.vmem %s1, %s180
        %p182 = pneg %p86
        %p183 = pneg %p83
        %p184 = pneg %p114
        %p185 = pneg %p111
        %s186 = sand.u32 %s101, 1
        %s187 = scalar_lea.sflag [#allocation4], %s186
        %s188 = sand.u32 %s101, 1
        %s189 = smul.addr %s188, 24
        %s190 = scalar_lea.vmem [#allocation3], %s189
        %p191 = scmp.lt.s32.totalorder %s21, 1
        %s192 = scalar_select %p191, %s21, 1
        %p193 = scmp.lt.s32.totalorder %s22, 0
        %s194 = scalar_select %p193, %s22, 0
        %p195 = scmp.lt.s32.totalorder %s23, 0
        %s196 = scalar_select %p195, %s23, 0
        %s197 = smul.addr %s196, 4
        %s198 = smul.addr %s194, 4
        %s199 = sadd.s32 %s197, %s198
        %s200 = smul.addr %s192, 4
        %s201 = sadd.s32 %s199, %s200
        %s202 = smul.addr %s201, 4
        %s203 = scalar_lea.vmem %s0, %s202
        %p204 = scmp.lt.s32.totalorder %s23, 0
        %s205 = scalar_select %p204, %s23, 0
        %s206 = smul.addr %s205, 8
        %s207 = scalar_lea.vmem %s1, %s206
        %p208 = scmp.eq.s32.totalorder %s23, 0
        // Predicated region
        $region29: #{tpu_custom_call.1} parent=27 // pred_check
          %p209 = pneg %p208
        $region30: #{tpu_custom_call.1} parent=27 // pred_check_branch
          %211 = sbr.rel (%p209) target = $region32
        $region31: #{tpu_custom_call.1} parent=27 // pred_region
          %212 = vst [vmem:[#allocation2] sm:$0xff] 0.0
          %213 = vst [vmem:[#allocation2 + $0x8] sm:$0xff] 0.0
          %214 = vst [vmem:[#allocation2 + $0x10] sm:$0xff] 0.0
        $region32: #{tpu_custom_call.1} parent=27 // pred_fallthru
          _
        %v215 = vld [vmem:[#allocation2] sm:$0xff]
        %v216 = vld [vmem:[#allocation2 + $0x8] sm:$0xff]
        %v217 = vld [vmem:[#allocation2 + $0x10] sm:$0xff]
        %v218 = vld [vmem:[%s203] sm:$0xff]
        %v219 = vld [vmem:[%s203 + $0x8] sm:$0xf]
        %v220 = vld [vmem:[%s207] sm:$0xff]
        %v223 = vcombine.high %v218, %v218
        %vm224 = vcmask 31744
        %v226 = vsel %vm224, %v220, 0
        %vm228 = vcmask 1043456
        %v229 = vsel %vm228, %v218, 0
        %v231 = vsel %vm228, %v223, 0
        %v233 = vsel %vm228, %v219, 0
        %235 = vmatprep.subr.mxu0 %v231
        %236 = vmatpush1.msra.mxu0 %v229
        %237 = vmatprep.subr.mxu0 0.0
        %238 = vmatpush1.msra.mxu0 0.0
        %239 = vmatprep.subr.mxu0 0.0
        %240 = vmatpush1.msra.mxu0 0.0
        %241 = vmatprep.subr.mxu0 0.0
        %242 = vmatpush1.msra.mxu0 0.0
        %243 = vmatprep.subr.mxu0 0.0
        %244 = vmatpush1.msra.mxu0 0.0
        %245 = vmatprep.subr.mxu0 0.0
        %246 = vmatpush1.msra.mxu0 0.0
        %247 = vmatprep.subr.mxu0 0.0
        %248 = vmatpush1.msra.mxu0 0.0
        %249 = vmatprep.subr.mxu0 0.0
        %250 = vmatpush1.msra.mxu0 0.0
        %251 = vmatprep.subr.mxu0 0.0
        %252 = vmatpush1.msra.mxu0 0.0
        %253 = vmatprep.subr.mxu0 0.0
        %254 = vmatpush1.msra.mxu0 0.0
        %255 = vmatprep.subr.mxu0 0.0
        %256 = vmatpush1.msra.mxu0 0.0
        %257 = vmatprep.subr.mxu0 0.0
        %258 = vmatpush1.msra.mxu0 0.0
        %259 = vmatprep.subr.mxu0 0.0
        %260 = vmatpush1.msra.mxu0 0.0
        %261 = vmatprep.subr.mxu0 0.0
        %262 = vmatpush1.msra.mxu0 0.0
        %263 = vmatprep.subr.mxu0 0.0
        %264 = vmatpush1.msra.mxu0 0.0
        %265 = vmatprep.subr.mxu0 0.0
        %266 = vmatpush1.msra.mxu0 0.0
        %267 = vmatprep.subr.mxu0 0.0
        %268 = vmatpush1.msra.mxu0 0.0
        %269 = vmatprep.subr.mxu0 0.0
        %270 = vmatpush1.msra.mxu0 0.0
        %271 = vmatprep.subr.mxu0 0.0
        %272 = vmatpush1.msra.mxu0 0.0
        %273 = vmatprep.subr.mxu0 0.0
        %274 = vmatpush1.msra.mxu0 0.0
        %275 = vmatprep.subr.mxu0 0.0
        %276 = vmatpush1.msra.mxu0 0.0
        %277 = vmatprep.subr.mxu0 0.0
        %278 = vmatpush1.msra.mxu0 0.0
        %279 = vmatprep.subr.mxu0 0.0
        %280 = vmatpush1.msra.mxu0 0.0
        %281 = vmatprep.subr.mxu0 0.0
        %282 = vmatpush1.msra.mxu0 0.0
        %283 = vmatprep.subr.mxu0 0.0
        %284 = vmatpush1.msra.mxu0 0.0
        %285 = vmatprep.subr.mxu0 0.0
        %286 = vmatpush1.msra.mxu0 0.0
        %287 = vmatprep.subr.mxu0 0.0
        %288 = vmatpush1.msra.mxu0 0.0
        %289 = vmatprep.subr.mxu0 0.0
        %290 = vmatpush1.msra.mxu0 0.0
        %291 = vmatprep.subr.mxu0 0.0
        %292 = vmatpush1.msra.mxu0 0.0
        %293 = vmatprep.subr.mxu0 0.0
        %294 = vmatpush1.msra.mxu0 0.0
        %295 = vmatprep.subr.mxu0 0.0
        %296 = vmatpush1.msra.mxu0 0.0
        %297 = vmatprep.subr.mxu0 0.0
        %298 = vmatpush1.msra.mxu0 0.0
        %299 = vmatprep.mubr.f32.mxu0 0.0
        %300 = vmatmul.mubr.f32.gmra.mrb[0].mxu0 %v226
        %v301 = vpop.f32.mrb[0].mxu0
        %v302 = vadd.f32 0.0, %v301
        %v303 = vpop.f32.mrb[0].mxu0
        %v304 = vadd.f32 0.0, %v303
        %305 = vdwg.mxu0
        %306 = vmatprep.subr.mxu0 0.0
        %307 = vmatpush1.msra.mxu0 %v233
        %308 = vmatprep.subr.mxu0 0.0
        %309 = vmatpush1.msra.mxu0 0.0
        %310 = vmatprep.subr.mxu0 0.0
        %311 = vmatpush1.msra.mxu0 0.0
        %312 = vmatprep.subr.mxu0 0.0
        %313 = vmatpush1.msra.mxu0 0.0
        %314 = vmatprep.subr.mxu0 0.0
        %315 = vmatpush1.msra.mxu0 0.0
        %316 = vmatprep.subr.mxu0 0.0
        %317 = vmatpush1.msra.mxu0 0.0
        %318 = vmatprep.subr.mxu0 0.0
        %319 = vmatpush1.msra.mxu0 0.0
        %320 = vmatprep.subr.mxu0 0.0
        %321 = vmatpush1.msra.mxu0 0.0
        %322 = vmatprep.subr.mxu0 0.0
        %323 = vmatpush1.msra.mxu0 0.0
        %324 = vmatprep.subr.mxu0 0.0
        %325 = vmatpush1.msra.mxu0 0.0
        %326 = vmatprep.subr.mxu0 0.0
        %327 = vmatpush1.msra.mxu0 0.0
        %328 = vmatprep.subr.mxu0 0.0
        %329 = vmatpush1.msra.mxu0 0.0
        %330 = vmatprep.subr.mxu0 0.0
        %331 = vmatpush1.msra.mxu0 0.0
        %332 = vmatprep.subr.mxu0 0.0
        %333 = vmatpush1.msra.mxu0 0.0
        %334 = vmatprep.subr.mxu0 0.0
        %335 = vmatpush1.msra.mxu0 0.0
        %336 = vmatprep.subr.mxu0 0.0
        %337 = vmatpush1.msra.mxu0 0.0
        %338 = vmatprep.subr.mxu0 0.0
        %339 = vmatpush1.msra.mxu0 0.0
        %340 = vmatprep.subr.mxu0 0.0
        %341 = vmatpush1.msra.mxu0 0.0
        %342 = vmatprep.subr.mxu0 0.0
        %343 = vmatpush1.msra.mxu0 0.0
        %344 = vmatprep.subr.mxu0 0.0
        %345 = vmatpush1.msra.mxu0 0.0
        %346 = vmatprep.subr.mxu0 0.0
        %347 = vmatpush1.msra.mxu0 0.0
        %348 = vmatprep.subr.mxu0 0.0
        %349 = vmatpush1.msra.mxu0 0.0
        %350 = vmatprep.subr.mxu0 0.0
        %351 = vmatpush1.msra.mxu0 0.0
        %352 = vmatprep.subr.mxu0 0.0
        %353 = vmatpush1.msra.mxu0 0.0
        %354 = vmatprep.subr.mxu0 0.0
        %355 = vmatpush1.msra.mxu0 0.0
        %356 = vmatprep.subr.mxu0 0.0
        %357 = vmatpush1.msra.mxu0 0.0
        %358 = vmatprep.subr.mxu0 0.0
        %359 = vmatpush1.msra.mxu0 0.0
        %360 = vmatprep.subr.mxu0 0.0
        %361 = vmatpush1.msra.mxu0 0.0
        %362 = vmatprep.subr.mxu0 0.0
        %363 = vmatpush1.msra.mxu0 0.0
        %364 = vmatprep.subr.mxu0 0.0
        %365 = vmatpush1.msra.mxu0 0.0
        %366 = vmatprep.subr.mxu0 0.0
        %367 = vmatpush1.msra.mxu0 0.0
        %368 = vmatprep.subr.mxu0 0.0
        %369 = vmatpush1.msra.mxu0 0.0
        %370 = vmatprep.mubr.f32.mxu0 0.0
        %371 = vmatmul.mubr.f32.gmra.mrb[0].mxu0 %v226
        %v372 = vpop.f32.mrb[0].mxu0
        %v373 = vadd.f32 0.0, %v372
        %v374 = vpop.f32.mrb[0].mxu0
        %375 = vdwg.mxu0
        %v376 = vadd.f32 %v215, %v302
        %v377 = vadd.f32 %v216, %v304
        %v378 = vadd.f32 %v217, %v373
        %v379 = vld [vmem:[%s203] sm:$0xff]
        %v380 = vld [vmem:[%s203 + $0x8] sm:$0xff]
        %s381 = scalar_lea.vmem %s207, 8
        %v382 = vld [vmem:[%s381] sm:$0xff]
        %v385 = vcombine.high %v379, %v379
        %v386 = vcombine.high %v380, %v380
        %387 = vrot.lane.b32.xlu0 %v379, 127
        %v388 = vpop.permute.xlu0 %387
        %389 = vrot.lane.b32.xlu0 %v385, 127
        %v390 = vpop.permute.xlu0 %389
        %391 = vrot.lane.b32.xlu0 %v380, 127
        %v392 = vpop.permute.xlu0 %391
        %393 = vrot.lane.b32.xlu0 %v386, 127
        %v394 = vpop.permute.xlu0 %393
        %vm395 = vcmask 1039360
        %v396 = vsel %vm395, %v388, %v390
        %v397 = vsel %vm395, %v390, %v392
        %v398 = vsel %vm395, %v392, %v394
        %v400 = vsel %vm224, %v382, 0
        %v402 = vsel %vm228, %v396, 0
        %v404 = vsel %vm228, %v397, 0
        %v406 = vsel %vm228, %v398, 0
        %408 = vmatprep.subr.mxu0 %v404
        %409 = vmatpush1.msra.mxu0 %v402
        %410 = vmatprep.subr.mxu0 0.0
        %411 = vmatpush1.msra.mxu0 0.0
        %412 = vmatprep.subr.mxu0 0.0
        %413 = vmatpush1.msra.mxu0 0.0
        %414 = vmatprep.subr.mxu0 0.0
        %415 = vmatpush1.msra.mxu0 0.0
        %416 = vmatprep.subr.mxu0 0.0
        %417 = vmatpush1.msra.mxu0 0.0
        %418 = vmatprep.subr.mxu0 0.0
        %419 = vmatpush1.msra.mxu0 0.0
        %420 = vmatprep.subr.mxu0 0.0
        %421 = vmatpush1.msra.mxu0 0.0
        %422 = vmatprep.subr.mxu0 0.0
        %423 = vmatpush1.msra.mxu0 0.0
        %424 = vmatprep.subr.mxu0 0.0
        %425 = vmatpush1.msra.mxu0 0.0
        %426 = vmatprep.subr.mxu0 0.0
        %427 = vmatpush1.msra.mxu0 0.0
        %428 = vmatprep.subr.mxu0 0.0
        %429 = vmatpush1.msra.mxu0 0.0
        %430 = vmatprep.subr.mxu0 0.0
        %431 = vmatpush1.msra.mxu0 0.0
        %432 = vmatprep.subr.mxu0 0.0
        %433 = vmatpush1.msra.mxu0 0.0
        %434 = vmatprep.subr.mxu0 0.0
        %435 = vmatpush1.msra.mxu0 0.0
        %436 = vmatprep.subr.mxu0 0.0
        %437 = vmatpush1.msra.mxu0 0.0
        %438 = vmatprep.subr.mxu0 0.0
        %439 = vmatpush1.msra.mxu0 0.0
        %440 = vmatprep.subr.mxu0 0.0
        %441 = vmatpush1.msra.mxu0 0.0
        %442 = vmatprep.subr.mxu0 0.0
        %443 = vmatpush1.msra.mxu0 0.0
        %444 = vmatprep.subr.mxu0 0.0
        %445 = vmatpush1.msra.mxu0 0.0
        %446 = vmatprep.subr.mxu0 0.0
        %447 = vmatpush1.msra.mxu0 0.0
        %448 = vmatprep.subr.mxu0 0.0
        %449 = vmatpush1.msra.mxu0 0.0
        %450 = vmatprep.subr.mxu0 0.0
        %451 = vmatpush1.msra.mxu0 0.0
        %452 = vmatprep.subr.mxu0 0.0
        %453 = vmatpush1.msra.mxu0 0.0
        %454 = vmatprep.subr.mxu0 0.0
        %455 = vmatpush1.msra.mxu0 0.0
        %456 = vmatprep.subr.mxu0 0.0
        %457 = vmatpush1.msra.mxu0 0.0
        %458 = vmatprep.subr.mxu0 0.0
        %459 = vmatpush1.msra.mxu0 0.0
        %460 = vmatprep.subr.mxu0 0.0
        %461 = vmatpush1.msra.mxu0 0.0
        %462 = vmatprep.subr.mxu0 0.0
        %463 = vmatpush1.msra.mxu0 0.0
        %464 = vmatprep.subr.mxu0 0.0
        %465 = vmatpush1.msra.mxu0 0.0
        %466 = vmatprep.subr.mxu0 0.0
        %467 = vmatpush1.msra.mxu0 0.0
        %468 = vmatprep.subr.mxu0 0.0
        %469 = vmatpush1.msra.mxu0 0.0
        %470 = vmatprep.subr.mxu0 0.0
        %471 = vmatpush1.msra.mxu0 0.0
        %472 = vmatprep.mubr.f32.mxu0 0.0
        %473 = vmatmul.mubr.f32.gmra.mrb[0].mxu0 %v400
        %v474 = vpop.f32.mrb[0].mxu0
        %v475 = vadd.f32 0.0, %v474
        %v476 = vpop.f32.mrb[0].mxu0
        %v477 = vadd.f32 0.0, %v476
        %478 = vdwg.mxu0
        %479 = vmatprep.subr.mxu0 0.0
        %480 = vmatpush1.msra.mxu0 %v406
        %481 = vmatprep.subr.mxu0 0.0
        %482 = vmatpush1.msra.mxu0 0.0
        %483 = vmatprep.subr.mxu0 0.0
        %484 = vmatpush1.msra.mxu0 0.0
        %485 = vmatprep.subr.mxu0 0.0
        %486 = vmatpush1.msra.mxu0 0.0
        %487 = vmatprep.subr.mxu0 0.0
        %488 = vmatpush1.msra.mxu0 0.0
        %489 = vmatprep.subr.mxu0 0.0
        %490 = vmatpush1.msra.mxu0 0.0
        %491 = vmatprep.subr.mxu0 0.0
        %492 = vmatpush1.msra.mxu0 0.0
        %493 = vmatprep.subr.mxu0 0.0
        %494 = vmatpush1.msra.mxu0 0.0
        %495 = vmatprep.subr.mxu0 0.0
        %496 = vmatpush1.msra.mxu0 0.0
        %497 = vmatprep.subr.mxu0 0.0
        %498 = vmatpush1.msra.mxu0 0.0
        %499 = vmatprep.subr.mxu0 0.0
        %500 = vmatpush1.msra.mxu0 0.0
        %501 = vmatprep.subr.mxu0 0.0
        %502 = vmatpush1.msra.mxu0 0.0
        %503 = vmatprep.subr.mxu0 0.0
        %504 = vmatpush1.msra.mxu0 0.0
        %505 = vmatprep.subr.mxu0 0.0
        %506 = vmatpush1.msra.mxu0 0.0
        %507 = vmatprep.subr.mxu0 0.0
        %508 = vmatpush1.msra.mxu0 0.0
        %509 = vmatprep.subr.mxu0 0.0
        %510 = vmatpush1.msra.mxu0 0.0
        %511 = vmatprep.subr.mxu0 0.0
        %512 = vmatpush1.msra.mxu0 0.0
        %513 = vmatprep.subr.mxu0 0.0
        %514 = vmatpush1.msra.mxu0 0.0
        %515 = vmatprep.subr.mxu0 0.0
        %516 = vmatpush1.msra.mxu0 0.0
        %517 = vmatprep.subr.mxu0 0.0
        %518 = vmatpush1.msra.mxu0 0.0
        %519 = vmatprep.subr.mxu0 0.0
        %520 = vmatpush1.msra.mxu0 0.0
        %521 = vmatprep.subr.mxu0 0.0
        %522 = vmatpush1.msra.mxu0 0.0
        %523 = vmatprep.subr.mxu0 0.0
        %524 = vmatpush1.msra.mxu0 0.0
        %525 = vmatprep.subr.mxu0 0.0
        %526 = vmatpush1.msra.mxu0 0.0
        %527 = vmatprep.subr.mxu0 0.0
        %528 = vmatpush1.msra.mxu0 0.0
        %529 = vmatprep.subr.mxu0 0.0
        %530 = vmatpush1.msra.mxu0 0.0
        %531 = vmatprep.subr.mxu0 0.0
        %532 = vmatpush1.msra.mxu0 0.0
        %533 = vmatprep.subr.mxu0 0.0
        %534 = vmatpush1.msra.mxu0 0.0
        %535 = vmatprep.subr.mxu0 0.0
        %536 = vmatpush1.msra.mxu0 0.0
        %537 = vmatprep.subr.mxu0 0.0
        %538 = vmatpush1.msra.mxu0 0.0
        %539 = vmatprep.subr.mxu0 0.0
        %540 = vmatpush1.msra.mxu0 0.0
        %541 = vmatprep.subr.mxu0 0.0
        %542 = vmatpush1.msra.mxu0 0.0
        %543 = vmatprep.mubr.f32.mxu0 0.0
        %544 = vmatmul.mubr.f32.gmra.mrb[0].mxu0 %v400
        %v545 = vpop.f32.mrb[0].mxu0
        %v546 = vadd.f32 0.0, %v545
        %v547 = vpop.f32.mrb[0].mxu0
        %548 = vdwg.mxu0
        %v549 = vadd.f32 %v376, %v475
        %v550 = vadd.f32 %v377, %v477
        %v551 = vadd.f32 %v378, %v546
        %v552 = vld [vmem:[%s203] sm:$0xff]
        %v553 = vld [vmem:[%s203 + $0x8] sm:$0xff]
        %s554 = scalar_lea.vmem %s207, 16
        %v555 = vld [vmem:[%s554] sm:$0xff]
        %v558 = vcombine.high %v552, %v552
        %v559 = vcombine.high %v553, %v553
        %560 = vrot.lane.b32.xlu0 %v552, 126
        %v561 = vpop.permute.xlu0 %560
        %562 = vrot.lane.b32.xlu0 %v558, 126
        %v563 = vpop.permute.xlu0 %562
        %564 = vrot.lane.b32.xlu0 %v553, 126
        %v565 = vpop.permute.xlu0 %564
        %566 = vrot.lane.b32.xlu0 %v559, 126
        %v567 = vpop.permute.xlu0 %566
        %vm568 = vcmask 1031168
        %v569 = vsel %vm568, %v561, %v563
        %v570 = vsel %vm568, %v563, %v565
        %v571 = vsel %vm568, %v565, %v567
        %v573 = vsel %vm224, %v555, 0
        %v575 = vsel %vm228, %v569, 0
        %v577 = vsel %vm228, %v570, 0
        %v579 = vsel %vm228, %v571, 0
        %581 = vmatprep.subr.mxu0 %v577
        %582 = vmatpush1.msra.mxu0 %v575
        %583 = vmatprep.subr.mxu0 0.0
        %584 = vmatpush1.msra.mxu0 0.0
        %585 = vmatprep.subr.mxu0 0.0
        %586 = vmatpush1.msra.mxu0 0.0
        %587 = vmatprep.subr.mxu0 0.0
        %588 = vmatpush1.msra.mxu0 0.0
        %589 = vmatprep.subr.mxu0 0.0
        %590 = vmatpush1.msra.mxu0 0.0
        %591 = vmatprep.subr.mxu0 0.0
        %592 = vmatpush1.msra.mxu0 0.0
        %593 = vmatprep.subr.mxu0 0.0
        %594 = vmatpush1.msra.mxu0 0.0
        %595 = vmatprep.subr.mxu0 0.0
        %596 = vmatpush1.msra.mxu0 0.0
        %597 = vmatprep.subr.mxu0 0.0
        %598 = vmatpush1.msra.mxu0 0.0
        %599 = vmatprep.subr.mxu0 0.0
        %600 = vmatpush1.msra.mxu0 0.0
        %601 = vmatprep.subr.mxu0 0.0
        %602 = vmatpush1.msra.mxu0 0.0
        %603 = vmatprep.subr.mxu0 0.0
        %604 = vmatpush1.msra.mxu0 0.0
        %605 = vmatprep.subr.mxu0 0.0
        %606 = vmatpush1.msra.mxu0 0.0
        %607 = vmatprep.subr.mxu0 0.0
        %608 = vmatpush1.msra.mxu0 0.0
        %609 = vmatprep.subr.mxu0 0.0
        %610 = vmatpush1.msra.mxu0 0.0
        %611 = vmatprep.subr.mxu0 0.0
        %612 = vmatpush1.msra.mxu0 0.0
        %613 = vmatprep.subr.mxu0 0.0
        %614 = vmatpush1.msra.mxu0 0.0
        %615 = vmatprep.subr.mxu0 0.0
        %616 = vmatpush1.msra.mxu0 0.0
        %617 = vmatprep.subr.mxu0 0.0
        %618 = vmatpush1.msra.mxu0 0.0
        %619 = vmatprep.subr.mxu0 0.0
        %620 = vmatpush1.msra.mxu0 0.0
        %621 = vmatprep.subr.mxu0 0.0
        %622 = vmatpush1.msra.mxu0 0.0
        %623 = vmatprep.subr.mxu0 0.0
        %624 = vmatpush1.msra.mxu0 0.0
        %625 = vmatprep.subr.mxu0 0.0
        %626 = vmatpush1.msra.mxu0 0.0
        %627 = vmatprep.subr.mxu0 0.0
        %628 = vmatpush1.msra.mxu0 0.0
        %629 = vmatprep.subr.mxu0 0.0
        %630 = vmatpush1.msra.mxu0 0.0
        %631 = vmatprep.subr.mxu0 0.0
        %632 = vmatpush1.msra.mxu0 0.0
        %633 = vmatprep.subr.mxu0 0.0
        %634 = vmatpush1.msra.mxu0 0.0
        %635 = vmatprep.subr.mxu0 0.0
        %636 = vmatpush1.msra.mxu0 0.0
        %637 = vmatprep.subr.mxu0 0.0
        %638 = vmatpush1.msra.mxu0 0.0
        %639 = vmatprep.subr.mxu0 0.0
        %640 = vmatpush1.msra.mxu0 0.0
        %641 = vmatprep.subr.mxu0 0.0
        %642 = vmatpush1.msra.mxu0 0.0
        %643 = vmatprep.subr.mxu0 0.0
        %644 = vmatpush1.msra.mxu0 0.0
        %645 = vmatprep.mubr.f32.mxu0 0.0
        %646 = vmatmul.mubr.f32.gmra.mrb[0].mxu0 %v573
        %v647 = vpop.f32.mrb[0].mxu0
        %v648 = vadd.f32 0.0, %v647
        %v649 = vpop.f32.mrb[0].mxu0
        %v650 = vadd.f32 0.0, %v649
        %651 = vdwg.mxu0
        %652 = vmatprep.subr.mxu0 0.0
        %653 = vmatpush1.msra.mxu0 %v579
        %654 = vmatprep.subr.mxu0 0.0
        %655 = vmatpush1.msra.mxu0 0.0
        %656 = vmatprep.subr.mxu0 0.0
        %657 = vmatpush1.msra.mxu0 0.0
        %658 = vmatprep.subr.mxu0 0.0
        %659 = vmatpush1.msra.mxu0 0.0
        %660 = vmatprep.subr.mxu0 0.0
        %661 = vmatpush1.msra.mxu0 0.0
        %662 = vmatprep.subr.mxu0 0.0
        %663 = vmatpush1.msra.mxu0 0.0
        %664 = vmatprep.subr.mxu0 0.0
        %665 = vmatpush1.msra.mxu0 0.0
        %666 = vmatprep.subr.mxu0 0.0
        %667 = vmatpush1.msra.mxu0 0.0
        %668 = vmatprep.subr.mxu0 0.0
        %669 = vmatpush1.msra.mxu0 0.0
        %670 = vmatprep.subr.mxu0 0.0
        %671 = vmatpush1.msra.mxu0 0.0
        %672 = vmatprep.subr.mxu0 0.0
        %673 = vmatpush1.msra.mxu0 0.0
        %674 = vmatprep.subr.mxu0 0.0
        %675 = vmatpush1.msra.mxu0 0.0
        %676 = vmatprep.subr.mxu0 0.0
        %677 = vmatpush1.msra.mxu0 0.0
        %678 = vmatprep.subr.mxu0 0.0
        %679 = vmatpush1.msra.mxu0 0.0
        %680 = vmatprep.subr.mxu0 0.0
        %681 = vmatpush1.msra.mxu0 0.0
        %682 = vmatprep.subr.mxu0 0.0
        %683 = vmatpush1.msra.mxu0 0.0
        %684 = vmatprep.subr.mxu0 0.0
        %685 = vmatpush1.msra.mxu0 0.0
        %686 = vmatprep.subr.mxu0 0.0
        %687 = vmatpush1.msra.mxu0 0.0
        %688 = vmatprep.subr.mxu0 0.0
        %689 = vmatpush1.msra.mxu0 0.0
        %690 = vmatprep.subr.mxu0 0.0
        %691 = vmatpush1.msra.mxu0 0.0
        %692 = vmatprep.subr.mxu0 0.0
        %693 = vmatpush1.msra.mxu0 0.0
        %694 = vmatprep.subr.mxu0 0.0
        %695 = vmatpush1.msra.mxu0 0.0
        %696 = vmatprep.subr.mxu0 0.0
        %697 = vmatpush1.msra.mxu0 0.0
        %698 = vmatprep.subr.mxu0 0.0
        %699 = vmatpush1.msra.mxu0 0.0
        %700 = vmatprep.subr.mxu0 0.0
        %701 = vmatpush1.msra.mxu0 0.0
        %702 = vmatprep.subr.mxu0 0.0
        %703 = vmatpush1.msra.mxu0 0.0
        %704 = vmatprep.subr.mxu0 0.0
        %705 = vmatpush1.msra.mxu0 0.0
        %706 = vmatprep.subr.mxu0 0.0
        %707 = vmatpush1.msra.mxu0 0.0
        %708 = vmatprep.subr.mxu0 0.0
        %709 = vmatpush1.msra.mxu0 0.0
        %710 = vmatprep.subr.mxu0 0.0
        %711 = vmatpush1.msra.mxu0 0.0
        %712 = vmatprep.subr.mxu0 0.0
        %713 = vmatpush1.msra.mxu0 0.0
        %714 = vmatprep.subr.mxu0 0.0
        %715 = vmatpush1.msra.mxu0 0.0
        %716 = vmatprep.mubr.f32.mxu0 0.0
        %717 = vmatmul.mubr.f32.gmra.mrb[0].mxu0 %v573
        %v718 = vpop.f32.mrb[0].mxu0
        %v719 = vadd.f32 0.0, %v718
        %v720 = vpop.f32.mrb[0].mxu0
        %721 = vdwg.mxu0
        %v722 = vadd.f32 %v549, %v648
        %v723 = vadd.f32 %v550, %v650
        %v724 = vadd.f32 %v551, %v719
        %v725 = vld [vmem:[%s203] sm:$0xff]
        %v726 = vld [vmem:[%s203 + $0x8] sm:$0xff]
        %s727 = scalar_lea.vmem %s207, 24
        %v728 = vld [vmem:[%s727] sm:$0xff]
        %v731 = vcombine.high %v725, %v725
        %v732 = vcombine.high %v726, %v726
        %733 = vrot.lane.b32.xlu0 %v725, 110
        %v734 = vpop.permute.xlu0 %733
        %735 = vrot.lane.b32.xlu0 %v731, 110
        %v736 = vpop.permute.xlu0 %735
        %737 = vrot.lane.b32.xlu0 %v726, 110
        %v738 = vpop.permute.xlu0 %737
        %739 = vrot.lane.b32.xlu0 %v732, 110
        %v740 = vpop.permute.xlu0 %739
        %vm741 = vcmask 900096
        %v742 = vsel %vm741, %v734, %v736
        %v743 = vsel %vm741, %v736, %v738
        %v744 = vsel %vm741, %v738, %v740
        %v746 = vsel %vm224, %v728, 0
        %v748 = vsel %vm228, %v742, 0
        %v750 = vsel %vm228, %v743, 0
        %v752 = vsel %vm228, %v744, 0
        %754 = vmatprep.subr.mxu0 %v750
        %755 = vmatpush1.msra.mxu0 %v748
        %756 = vmatprep.subr.mxu0 0.0
        %757 = vmatpush1.msra.mxu0 0.0
        %758 = vmatprep.subr.mxu0 0.0
        %759 = vmatpush1.msra.mxu0 0.0
        %760 = vmatprep.subr.mxu0 0.0
        %761 = vmatpush1.msra.mxu0 0.0
        %762 = vmatprep.subr.mxu0 0.0
        %763 = vmatpush1.msra.mxu0 0.0
        %764 = vmatprep.subr.mxu0 0.0
        %765 = vmatpush1.msra.mxu0 0.0
        %766 = vmatprep.subr.mxu0 0.0
        %767 = vmatpush1.msra.mxu0 0.0
        %768 = vmatprep.subr.mxu0 0.0
        %769 = vmatpush1.msra.mxu0 0.0
        %770 = vmatprep.subr.mxu0 0.0
        %771 = vmatpush1.msra.mxu0 0.0
        %772 = vmatprep.subr.mxu0 0.0
        %773 = vmatpush1.msra.mxu0 0.0
        %774 = vmatprep.subr.mxu0 0.0
        %775 = vmatpush1.msra.mxu0 0.0
        %776 = vmatprep.subr.mxu0 0.0
        %777 = vmatpush1.msra.mxu0 0.0
        %778 = vmatprep.subr.mxu0 0.0
        %779 = vmatpush1.msra.mxu0 0.0
        %780 = vmatprep.subr.mxu0 0.0
        %781 = vmatpush1.msra.mxu0 0.0
        %782 = vmatprep.subr.mxu0 0.0
        %783 = vmatpush1.msra.mxu0 0.0
        %784 = vmatprep.subr.mxu0 0.0
        %785 = vmatpush1.msra.mxu0 0.0
        %786 = vmatprep.subr.mxu0 0.0
        %787 = vmatpush1.msra.mxu0 0.0
        %788 = vmatprep.subr.mxu0 0.0
        %789 = vmatpush1.msra.mxu0 0.0
        %790 = vmatprep.subr.mxu0 0.0
        %791 = vmatpush1.msra.mxu0 0.0
        %792 = vmatprep.subr.mxu0 0.0
        %793 = vmatpush1.msra.mxu0 0.0
        %794 = vmatprep.subr.mxu0 0.0
        %795 = vmatpush1.msra.mxu0 0.0
        %796 = vmatprep.subr.mxu0 0.0
        %797 = vmatpush1.msra.mxu0 0.0
        %798 = vmatprep.subr.mxu0 0.0
        %799 = vmatpush1.msra.mxu0 0.0
        %800 = vmatprep.subr.mxu0 0.0
        %801 = vmatpush1.msra.mxu0 0.0
        %802 = vmatprep.subr.mxu0 0.0
        %803 = vmatpush1.msra.mxu0 0.0
        %804 = vmatprep.subr.mxu0 0.0
        %805 = vmatpush1.msra.mxu0 0.0
        %806 = vmatprep.subr.mxu0 0.0
        %807 = vmatpush1.msra.mxu0 0.0
        %808 = vmatprep.subr.mxu0 0.0
        %809 = vmatpush1.msra.mxu0 0.0
        %810 = vmatprep.subr.mxu0 0.0
        %811 = vmatpush1.msra.mxu0 0.0
        %812 = vmatprep.subr.mxu0 0.0
        %813 = vmatpush1.msra.mxu0 0.0
        %814 = vmatprep.subr.mxu0 0.0
        %815 = vmatpush1.msra.mxu0 0.0
        %816 = vmatprep.subr.mxu0 0.0
        %817 = vmatpush1.msra.mxu0 0.0
        %818 = vmatprep.mubr.f32.mxu0 0.0
        %819 = vmatmul.mubr.f32.gmra.mrb[0].mxu0 %v746
        %v820 = vpop.f32.mrb[0].mxu0
        %v821 = vadd.f32 0.0, %v820
        %v822 = vpop.f32.mrb[0].mxu0
        %v823 = vadd.f32 0.0, %v822
        %824 = vdwg.mxu0
        %825 = vmatprep.subr.mxu0 0.0
        %826 = vmatpush1.msra.mxu0 %v752
        %827 = vmatprep.subr.mxu0 0.0
        %828 = vmatpush1.msra.mxu0 0.0
        %829 = vmatprep.subr.mxu0 0.0
        %830 = vmatpush1.msra.mxu0 0.0
        %831 = vmatprep.subr.mxu0 0.0
        %832 = vmatpush1.msra.mxu0 0.0
        %833 = vmatprep.subr.mxu0 0.0
        %834 = vmatpush1.msra.mxu0 0.0
        %835 = vmatprep.subr.mxu0 0.0
        %836 = vmatpush1.msra.mxu0 0.0
        %837 = vmatprep.subr.mxu0 0.0
        %838 = vmatpush1.msra.mxu0 0.0
        %839 = vmatprep.subr.mxu0 0.0
        %840 = vmatpush1.msra.mxu0 0.0
        %841 = vmatprep.subr.mxu0 0.0
        %842 = vmatpush1.msra.mxu0 0.0
        %843 = vmatprep.subr.mxu0 0.0
        %844 = vmatpush1.msra.mxu0 0.0
        %845 = vmatprep.subr.mxu0 0.0
        %846 = vmatpush1.msra.mxu0 0.0
        %847 = vmatprep.subr.mxu0 0.0
        %848 = vmatpush1.msra.mxu0 0.0
        %849 = vmatprep.subr.mxu0 0.0
        %850 = vmatpush1.msra.mxu0 0.0
        %851 = vmatprep.subr.mxu0 0.0
        %852 = vmatpush1.msra.mxu0 0.0
        %853 = vmatprep.subr.mxu0 0.0
        %854 = vmatpush1.msra.mxu0 0.0
        %855 = vmatprep.subr.mxu0 0.0
        %856 = vmatpush1.msra.mxu0 0.0
        %857 = vmatprep.subr.mxu0 0.0
        %858 = vmatpush1.msra.mxu0 0.0
        %859 = vmatprep.subr.mxu0 0.0
        %860 = vmatpush1.msra.mxu0 0.0
        %861 = vmatprep.subr.mxu0 0.0
        %862 = vmatpush1.msra.mxu0 0.0
        %863 = vmatprep.subr.mxu0 0.0
        %864 = vmatpush1.msra.mxu0 0.0
        %865 = vmatprep.subr.mxu0 0.0
        %866 = vmatpush1.msra.mxu0 0.0
        %867 = vmatprep.subr.mxu0 0.0
        %868 = vmatpush1.msra.mxu0 0.0
        %869 = vmatprep.subr.mxu0 0.0
        %870 = vmatpush1.msra.mxu0 0.0
        %871 = vmatprep.subr.mxu0 0.0
        %872 = vmatpush1.msra.mxu0 0.0
        %873 = vmatprep.subr.mxu0 0.0
        %874 = vmatpush1.msra.mxu0 0.0
        %875 = vmatprep.subr.mxu0 0.0
        %876 = vmatpush1.msra.mxu0 0.0
        %877 = vmatprep.subr.mxu0 0.0
        %878 = vmatpush1.msra.mxu0 0.0
        %879 = vmatprep.subr.mxu0 0.0
        %880 = vmatpush1.msra.mxu0 0.0
        %881 = vmatprep.subr.mxu0 0.0
        %882 = vmatpush1.msra.mxu0 0.0
        %883 = vmatprep.subr.mxu0 0.0
        %884 = vmatpush1.msra.mxu0 0.0
        %885 = vmatprep.subr.mxu0 0.0
        %886 = vmatpush1.msra.mxu0 0.0
        %887 = vmatprep.subr.mxu0 0.0
        %888 = vmatpush1.msra.mxu0 0.0
        %889 = vmatprep.mubr.f32.mxu0 0.0
        %890 = vmatmul.mubr.f32.gmra.mrb[0].mxu0 %v746
        %v891 = vpop.f32.mrb[0].mxu0
        %v892 = vadd.f32 0.0, %v891
        %v893 = vpop.f32.mrb[0].mxu0
        %894 = vdwg.mxu0
        %v895 = vadd.f32 %v722, %v821
        %v896 = vadd.f32 %v723, %v823
        %v897 = vadd.f32 %v724, %v892
        %v898 = vld [vmem:[%s203] sm:$0xff]
        %v899 = vld [vmem:[%s203 + $0x8] sm:$0xff]
        %s900 = scalar_lea.vmem %s207, 32
        %v901 = vld [vmem:[%s900] sm:$0xff]
        %v904 = vcombine.high %v898, %v898
        %v905 = vcombine.high %v899, %v899
        %906 = vrot.lane.b32.xlu0 %v898, 109
        %v907 = vpop.permute.xlu0 %906
        %908 = vrot.lane.b32.xlu0 %v904, 109
        %v909 = vpop.permute.xlu0 %908
        %910 = vrot.lane.b32.xlu0 %v899, 109
        %v911 = vpop.permute.xlu0 %910
        %912 = vrot.lane.b32.xlu0 %v905, 109
        %v913 = vpop.permute.xlu0 %912
        %vm914 = vcmask 891904
        %v915 = vsel %vm914, %v907, %v909
        %v916 = vsel %vm914, %v909, %v911
        %v917 = vsel %vm914, %v911, %v913
        %v919 = vsel %vm224, %v901, 0
        %v921 = vsel %vm228, %v915, 0
        %v923 = vsel %vm228, %v916, 0
        %v925 = vsel %vm228, %v917, 0
        %927 = vmatprep.subr.mxu0 %v923
        %928 = vmatpush1.msra.mxu0 %v921
        %929 = vmatprep.subr.mxu0 0.0
        %930 = vmatpush1.msra.mxu0 0.0
        %931 = vmatprep.subr.mxu0 0.0
        %932 = vmatpush1.msra.mxu0 0.0
        %933 = vmatprep.subr.mxu0 0.0
        %934 = vmatpush1.msra.mxu0 0.0
        %935 = vmatprep.subr.mxu0 0.0
        %936 = vmatpush1.msra.mxu0 0.0
        %937 = vmatprep.subr.mxu0 0.0
        %938 = vmatpush1.msra.mxu0 0.0
        %939 = vmatprep.subr.mxu0 0.0
        %940 = vmatpush1.msra.mxu0 0.0
        %941 = vmatprep.subr.mxu0 0.0
        %942 = vmatpush1.msra.mxu0 0.0
        %943 = vmatprep.subr.mxu0 0.0
        %944 = vmatpush1.msra.mxu0 0.0
        %945 = vmatprep.subr.mxu0 0.0
        %946 = vmatpush1.msra.mxu0 0.0
        %947 = vmatprep.subr.mxu0 0.0
        %948 = vmatpush1.msra.mxu0 0.0
        %949 = vmatprep.subr.mxu0 0.0
        %950 = vmatpush1.msra.mxu0 0.0
        %951 = vmatprep.subr.mxu0 0.0
        %952 = vmatpush1.msra.mxu0 0.0
        %953 = vmatprep.subr.mxu0 0.0
        %954 = vmatpush1.msra.mxu0 0.0
        %955 = vmatprep.subr.mxu0 0.0
        %956 = vmatpush1.msra.mxu0 0.0
        %957 = vmatprep.subr.mxu0 0.0
        %958 = vmatpush1.msra.mxu0 0.0
        %959 = vmatprep.subr.mxu0 0.0
        %960 = vmatpush1.msra.mxu0 0.0
        %961 = vmatprep.subr.mxu0 0.0
        %962 = vmatpush1.msra.mxu0 0.0
        %963 = vmatprep.subr.mxu0 0.0
        %964 = vmatpush1.msra.mxu0 0.0
        %965 = vmatprep.subr.mxu0 0.0
        %966 = vmatpush1.msra.mxu0 0.0
        %967 = vmatprep.subr.mxu0 0.0
        %968 = vmatpush1.msra.mxu0 0.0
        %969 = vmatprep.subr.mxu0 0.0
        %970 = vmatpush1.msra.mxu0 0.0
        %971 = vmatprep.subr.mxu0 0.0
        %972 = vmatpush1.msra.mxu0 0.0
        %973 = vmatprep.subr.mxu0 0.0
        %974 = vmatpush1.msra.mxu0 0.0
        %975 = vmatprep.subr.mxu0 0.0
        %976 = vmatpush1.msra.mxu0 0.0
        %977 = vmatprep.subr.mxu0 0.0
        %978 = vmatpush1.msra.mxu0 0.0
        %979 = vmatprep.subr.mxu0 0.0
        %980 = vmatpush1.msra.mxu0 0.0
        %981 = vmatprep.subr.mxu0 0.0
        %982 = vmatpush1.msra.mxu0 0.0
        %983 = vmatprep.subr.mxu0 0.0
        %984 = vmatpush1.msra.mxu0 0.0
        %985 = vmatprep.subr.mxu0 0.0
        %986 = vmatpush1.msra.mxu0 0.0
        %987 = vmatprep.subr.mxu0 0.0
        %988 = vmatpush1.msra.mxu0 0.0
        %989 = vmatprep.subr.mxu0 0.0
        %990 = vmatpush1.msra.mxu0 0.0
        %991 = vmatprep.mubr.f32.mxu0 0.0
        %992 = vmatmul.mubr.f32.gmra.mrb[0].mxu0 %v919
        %v993 = vpop.f32.mrb[0].mxu0
        %v994 = vadd.f32 0.0, %v993
        %v995 = vpop.f32.mrb[0].mxu0
        %v996 = vadd.f32 0.0, %v995
        %997 = vdwg.mxu0
        %998 = vmatprep.subr.mxu0 0.0
        %999 = vmatpush1.msra.mxu0 %v925
        %1000 = vmatprep.subr.mxu0 0.0
        %1001 = vmatpush1.msra.mxu0 0.0
        %1002 = vmatprep.subr.mxu0 0.0
        %1003 = vmatpush1.msra.mxu0 0.0
        %1004 = vmatprep.subr.mxu0 0.0
        %1005 = vmatpush1.msra.mxu0 0.0
        %1006 = vmatprep.subr.mxu0 0.0
        %1007 = vmatpush1.msra.mxu0 0.0
        %1008 = vmatprep.subr.mxu0 0.0
        %1009 = vmatpush1.msra.mxu0 0.0
        %1010 = vmatprep.subr.mxu0 0.0
        %1011 = vmatpush1.msra.mxu0 0.0
        %1012 = vmatprep.subr.mxu0 0.0
        %1013 = vmatpush1.msra.mxu0 0.0
        %1014 = vmatprep.subr.mxu0 0.0
        %1015 = vmatpush1.msra.mxu0 0.0
        %1016 = vmatprep.subr.mxu0 0.0
        %1017 = vmatpush1.msra.mxu0 0.0
        %1018 = vmatprep.subr.mxu0 0.0
        %1019 = vmatpush1.msra.mxu0 0.0
        %1020 = vmatprep.subr.mxu0 0.0
        %1021 = vmatpush1.msra.mxu0 0.0
        %1022 = vmatprep.subr.mxu0 0.0
        %1023 = vmatpush1.msra.mxu0 0.0
        %1024 = vmatprep.subr.mxu0 0.0
        %1025 = vmatpush1.msra.mxu0 0.0
        %1026 = vmatprep.subr.mxu0 0.0
        %1027 = vmatpush1.msra.mxu0 0.0
        %1028 = vmatprep.subr.mxu0 0.0
        %1029 = vmatpush1.msra.mxu0 0.0
        %1030 = vmatprep.subr.mxu0 0.0
        %1031 = vmatpush1.msra.mxu0 0.0
        %1032 = vmatprep.subr.mxu0 0.0
        %1033 = vmatpush1.msra.mxu0 0.0
        %1034 = vmatprep.subr.mxu0 0.0
        %1035 = vmatpush1.msra.mxu0 0.0
        %1036 = vmatprep.subr.mxu0 0.0
        %1037 = vmatpush1.msra.mxu0 0.0
        %1038 = vmatprep.subr.mxu0 0.0
        %1039 = vmatpush1.msra.mxu0 0.0
        %1040 = vmatprep.subr.mxu0 0.0
        %1041 = vmatpush1.msra.mxu0 0.0
        %1042 = vmatprep.subr.mxu0 0.0
        %1043 = vmatpush1.msra.mxu0 0.0
        %1044 = vmatprep.subr.mxu0 0.0
        %1045 = vmatpush1.msra.mxu0 0.0
        %1046 = vmatprep.subr.mxu0 0.0
        %1047 = vmatpush1.msra.mxu0 0.0
        %1048 = vmatprep.subr.mxu0 0.0
        %1049 = vmatpush1.msra.mxu0 0.0
        %1050 = vmatprep.subr.mxu0 0.0
        %1051 = vmatpush1.msra.mxu0 0.0
        %1052 = vmatprep.subr.mxu0 0.0
        %1053 = vmatpush1.msra.mxu0 0.0
        %1054 = vmatprep.subr.mxu0 0.0
        %1055 = vmatpush1.msra.mxu0 0.0
        %1056 = vmatprep.subr.mxu0 0.0
        %1057 = vmatpush1.msra.mxu0 0.0
        %1058 = vmatprep.subr.mxu0 0.0
        %1059 = vmatpush1.msra.mxu0 0.0
        %1060 = vmatprep.subr.mxu0 0.0
        %1061 = vmatpush1.msra.mxu0 0.0
        %1062 = vmatprep.mubr.f32.mxu0 0.0
        %1063 = vmatmul.mubr.f32.gmra.mrb[0].mxu0 %v919
        %v1064 = vpop.f32.mrb[0].mxu0
        %v1065 = vadd.f32 0.0, %v1064
        %v1066 = vpop.f32.mrb[0].mxu0
        %1067 = vdwg.mxu0
        %v1068 = vadd.f32 %v895, %v994
        %v1069 = vadd.f32 %v896, %v996
        %v1070 = vadd.f32 %v897, %v1065
        %v1071 = vld [vmem:[%s203] sm:$0xff]
        %v1072 = vld [vmem:[%s203 + $0x8] sm:$0xff]
        %s1073 = scalar_lea.vmem %s207, 40
        %v1074 = vld [vmem:[%s1073] sm:$0xff]
        %v1077 = vcombine.high %v1071, %v1071
        %v1078 = vcombine.high %v1072, %v1072
        %1079 = vrot.lane.b32.xlu0 %v1071, 108
        %v1080 = vpop.permute.xlu0 %1079
        %1081 = vrot.lane.b32.xlu0 %v1077, 108
        %v1082 = vpop.permute.xlu0 %1081
        %1083 = vrot.lane.b32.xlu0 %v1072, 108
        %v1084 = vpop.permute.xlu0 %1083
        %1085 = vrot.lane.b32.xlu0 %v1078, 108
        %v1086 = vpop.permute.xlu0 %1085
        %vm1087 = vcmask 883712
        %v1088 = vsel %vm1087, %v1080, %v1082
        %v1089 = vsel %vm1087, %v1082, %v1084
        %v1090 = vsel %vm1087, %v1084, %v1086
        %v1092 = vsel %vm224, %v1074, 0
        %v1094 = vsel %vm228, %v1088, 0
        %v1096 = vsel %vm228, %v1089, 0
        %v1098 = vsel %vm228, %v1090, 0
        %1100 = vmatprep.subr.mxu0 %v1096
        %1101 = vmatpush1.msra.mxu0 %v1094
        %1102 = vmatprep.subr.mxu0 0.0
        %1103 = vmatpush1.msra.mxu0 0.0
        %1104 = vmatprep.subr.mxu0 0.0
        %1105 = vmatpush1.msra.mxu0 0.0
        %1106 = vmatprep.subr.mxu0 0.0
        %1107 = vmatpush1.msra.mxu0 0.0
        %1108 = vmatprep.subr.mxu0 0.0
        %1109 = vmatpush1.msra.mxu0 0.0
        %1110 = vmatprep.subr.mxu0 0.0
        %1111 = vmatpush1.msra.mxu0 0.0
        %1112 = vmatprep.subr.mxu0 0.0
        %1113 = vmatpush1.msra.mxu0 0.0
        %1114 = vmatprep.subr.mxu0 0.0
        %1115 = vmatpush1.msra.mxu0 0.0
        %1116 = vmatprep.subr.mxu0 0.0
        %1117 = vmatpush1.msra.mxu0 0.0
        %1118 = vmatprep.subr.mxu0 0.0
        %1119 = vmatpush1.msra.mxu0 0.0
        %1120 = vmatprep.subr.mxu0 0.0
        %1121 = vmatpush1.msra.mxu0 0.0
        %1122 = vmatprep.subr.mxu0 0.0
        %1123 = vmatpush1.msra.mxu0 0.0
        %1124 = vmatprep.subr.mxu0 0.0
        %1125 = vmatpush1.msra.mxu0 0.0
        %1126 = vmatprep.subr.mxu0 0.0
        %1127 = vmatpush1.msra.mxu0 0.0
        %1128 = vmatprep.subr.mxu0 0.0
        %1129 = vmatpush1.msra.mxu0 0.0
        %1130 = vmatprep.subr.mxu0 0.0
        %1131 = vmatpush1.msra.mxu0 0.0
        %1132 = vmatprep.subr.mxu0 0.0
        %1133 = vmatpush1.msra.mxu0 0.0
        %1134 = vmatprep.subr.mxu0 0.0
        %1135 = vmatpush1.msra.mxu0 0.0
        %1136 = vmatprep.subr.mxu0 0.0
        %1137 = vmatpush1.msra.mxu0 0.0
        %1138 = vmatprep.subr.mxu0 0.0
        %1139 = vmatpush1.msra.mxu0 0.0
        %1140 = vmatprep.subr.mxu0 0.0
        %1141 = vmatpush1.msra.mxu0 0.0
        %1142 = vmatprep.subr.mxu0 0.0
        %1143 = vmatpush1.msra.mxu0 0.0
        %1144 = vmatprep.subr.mxu0 0.0
        %1145 = vmatpush1.msra.mxu0 0.0
        %1146 = vmatprep.subr.mxu0 0.0
        %1147 = vmatpush1.msra.mxu0 0.0
        %1148 = vmatprep.subr.mxu0 0.0
        %1149 = vmatpush1.msra.mxu0 0.0
        %1150 = vmatprep.subr.mxu0 0.0
        %1151 = vmatpush1.msra.mxu0 0.0
        %1152 = vmatprep.subr.mxu0 0.0
        %1153 = vmatpush1.msra.mxu0 0.0
        %1154 = vmatprep.subr.mxu0 0.0
        %1155 = vmatpush1.msra.mxu0 0.0
        %1156 = vmatprep.subr.mxu0 0.0
        %1157 = vmatpush1.msra.mxu0 0.0
        %1158 = vmatprep.subr.mxu0 0.0
        %1159 = vmatpush1.msra.mxu0 0.0
        %1160 = vmatprep.subr.mxu0 0.0
        %1161 = vmatpush1.msra.mxu0 0.0
        %1162 = vmatprep.subr.mxu0 0.0
        %1163 = vmatpush1.msra.mxu0 0.0
        %1164 = vmatprep.mubr.f32.mxu0 0.0
        %1165 = vmatmul.mubr.f32.gmra.mrb[0].mxu0 %v1092
        %v1166 = vpop.f32.mrb[0].mxu0
        %v1167 = vadd.f32 0.0, %v1166
        %v1168 = vpop.f32.mrb[0].mxu0
        %v1169 = vadd.f32 0.0, %v1168
        %1170 = vdwg.mxu0
        %1171 = vmatprep.subr.mxu0 0.0
        %1172 = vmatpush1.msra.mxu0 %v1098
        %1173 = vmatprep.subr.mxu0 0.0
        %1174 = vmatpush1.msra.mxu0 0.0
        %1175 = vmatprep.subr.mxu0 0.0
        %1176 = vmatpush1.msra.mxu0 0.0
        %1177 = vmatprep.subr.mxu0 0.0
        %1178 = vmatpush1.msra.mxu0 0.0
        %1179 = vmatprep.subr.mxu0 0.0
        %1180 = vmatpush1.msra.mxu0 0.0
        %1181 = vmatprep.subr.mxu0 0.0
        %1182 = vmatpush1.msra.mxu0 0.0
        %1183 = vmatprep.subr.mxu0 0.0
        %1184 = vmatpush1.msra.mxu0 0.0
        %1185 = vmatprep.subr.mxu0 0.0
        %1186 = vmatpush1.msra.mxu0 0.0
        %1187 = vmatprep.subr.mxu0 0.0
        %1188 = vmatpush1.msra.mxu0 0.0
        %1189 = vmatprep.subr.mxu0 0.0
        %1190 = vmatpush1.msra.mxu0 0.0
        %1191 = vmatprep.subr.mxu0 0.0
        %1192 = vmatpush1.msra.mxu0 0.0
        %1193 = vmatprep.subr.mxu0 0.0
        %1194 = vmatpush1.msra.mxu0 0.0
        %1195 = vmatprep.subr.mxu0 0.0
        %1196 = vmatpush1.msra.mxu0 0.0
        %1197 = vmatprep.subr.mxu0 0.0
        %1198 = vmatpush1.msra.mxu0 0.0
        %1199 = vmatprep.subr.mxu0 0.0
        %1200 = vmatpush1.msra.mxu0 0.0
        %1201 = vmatprep.subr.mxu0 0.0
        %1202 = vmatpush1.msra.mxu0 0.0
        %1203 = vmatprep.subr.mxu0 0.0
        %1204 = vmatpush1.msra.mxu0 0.0
        %1205 = vmatprep.subr.mxu0 0.0
        %1206 = vmatpush1.msra.mxu0 0.0
        %1207 = vmatprep.subr.mxu0 0.0
        %1208 = vmatpush1.msra.mxu0 0.0
        %1209 = vmatprep.subr.mxu0 0.0
        %1210 = vmatpush1.msra.mxu0 0.0
        %1211 = vmatprep.subr.mxu0 0.0
        %1212 = vmatpush1.msra.mxu0 0.0
        %1213 = vmatprep.subr.mxu0 0.0
        %1214 = vmatpush1.msra.mxu0 0.0
        %1215 = vmatprep.subr.mxu0 0.0
        %1216 = vmatpush1.msra.mxu0 0.0
        %1217 = vmatprep.subr.mxu0 0.0
        %1218 = vmatpush1.msra.mxu0 0.0
        %1219 = vmatprep.subr.mxu0 0.0
        %1220 = vmatpush1.msra.mxu0 0.0
        %1221 = vmatprep.subr.mxu0 0.0
        %1222 = vmatpush1.msra.mxu0 0.0
        %1223 = vmatprep.subr.mxu0 0.0
        %1224 = vmatpush1.msra.mxu0 0.0
        %1225 = vmatprep.subr.mxu0 0.0
        %1226 = vmatpush1.msra.mxu0 0.0
        %1227 = vmatprep.subr.mxu0 0.0
        %1228 = vmatpush1.msra.mxu0 0.0
        %1229 = vmatprep.subr.mxu0 0.0
        %1230 = vmatpush1.msra.mxu0 0.0
        %1231 = vmatprep.subr.mxu0 0.0
        %1232 = vmatpush1.msra.mxu0 0.0
        %1233 = vmatprep.subr.mxu0 0.0
        %1234 = vmatpush1.msra.mxu0 0.0
        %1235 = vmatprep.mubr.f32.mxu0 0.0
        %1236 = vmatmul.mubr.f32.gmra.mrb[0].mxu0 %v1092
        %v1237 = vpop.f32.mrb[0].mxu0
        %v1238 = vadd.f32 0.0, %v1237
        %v1239 = vpop.f32.mrb[0].mxu0
        %1240 = vdwg.mxu0
        %v1241 = vadd.f32 %v1068, %v1167
        %v1242 = vadd.f32 %v1069, %v1169
        %v1243 = vadd.f32 %v1070, %v1238
        %v1244 = vld [vmem:[%s203] sm:$0xff]
        %v1245 = vld [vmem:[%s203 + $0x8] sm:$0xff]
        %s1246 = scalar_lea.vmem %s207, 48
        %v1247 = vld [vmem:[%s1246] sm:$0xff]
        %v1250 = vcombine.high %v1244, %v1244
        %v1251 = vcombine.high %v1245, %v1245
        %1252 = vrot.lane.b32.xlu0 %v1244, 92
        %v1253 = vpop.permute.xlu0 %1252
        %1254 = vrot.lane.b32.xlu0 %v1250, 92
        %v1255 = vpop.permute.xlu0 %1254
        %1256 = vrot.lane.b32.xlu0 %v1245, 92
        %v1257 = vpop.permute.xlu0 %1256
        %1258 = vrot.lane.b32.xlu0 %v1251, 92
        %v1259 = vpop.permute.xlu0 %1258
        %vm1260 = vcmask 752640
        %v1261 = vsel %vm1260, %v1253, %v1255
        %v1262 = vsel %vm1260, %v1255, %v1257
        %v1263 = vsel %vm1260, %v1257, %v1259
        %v1265 = vsel %vm224, %v1247, 0
        %v1267 = vsel %vm228, %v1261, 0
        %v1269 = vsel %vm228, %v1262, 0
        %v1271 = vsel %vm228, %v1263, 0
        %1273 = vmatprep.subr.mxu0 %v1269
        %1274 = vmatpush1.msra.mxu0 %v1267
        %1275 = vmatprep.subr.mxu0 0.0
        %1276 = vmatpush1.msra.mxu0 0.0
        %1277 = vmatprep.subr.mxu0 0.0
        %1278 = vmatpush1.msra.mxu0 0.0
        %1279 = vmatprep.subr.mxu0 0.0
        %1280 = vmatpush1.msra.mxu0 0.0
        %1281 = vmatprep.subr.mxu0 0.0
        %1282 = vmatpush1.msra.mxu0 0.0
        %1283 = vmatprep.subr.mxu0 0.0
        %1284 = vmatpush1.msra.mxu0 0.0
        %1285 = vmatprep.subr.mxu0 0.0
        %1286 = vmatpush1.msra.mxu0 0.0
        %1287 = vmatprep.subr.mxu0 0.0
        %1288 = vmatpush1.msra.mxu0 0.0
        %1289 = vmatprep.subr.mxu0 0.0
        %1290 = vmatpush1.msra.mxu0 0.0
        %1291 = vmatprep.subr.mxu0 0.0
        %1292 = vmatpush1.msra.mxu0 0.0
        %1293 = vmatprep.subr.mxu0 0.0
        %1294 = vmatpush1.msra.mxu0 0.0
        %1295 = vmatprep.subr.mxu0 0.0
        %1296 = vmatpush1.msra.mxu0 0.0
        %1297 = vmatprep.subr.mxu0 0.0
        %1298 = vmatpush1.msra.mxu0 0.0
        %1299 = vmatprep.subr.mxu0 0.0
        %1300 = vmatpush1.msra.mxu0 0.0
        %1301 = vmatprep.subr.mxu0 0.0
        %1302 = vmatpush1.msra.mxu0 0.0
        %1303 = vmatprep.subr.mxu0 0.0
        %1304 = vmatpush1.msra.mxu0 0.0
        %1305 = vmatprep.subr.mxu0 0.0
        %1306 = vmatpush1.msra.mxu0 0.0
        %1307 = vmatprep.subr.mxu0 0.0
        %1308 = vmatpush1.msra.mxu0 0.0
        %1309 = vmatprep.subr.mxu0 0.0
        %1310 = vmatpush1.msra.mxu0 0.0
        %1311 = vmatprep.subr.mxu0 0.0
        %1312 = vmatpush1.msra.mxu0 0.0
        %1313 = vmatprep.subr.mxu0 0.0
        %1314 = vmatpush1.msra.mxu0 0.0
        %1315 = vmatprep.subr.mxu0 0.0
        %1316 = vmatpush1.msra.mxu0 0.0
        %1317 = vmatprep.subr.mxu0 0.0
        %1318 = vmatpush1.msra.mxu0 0.0
        %1319 = vmatprep.subr.mxu0 0.0
        %1320 = vmatpush1.msra.mxu0 0.0
        %1321 = vmatprep.subr.mxu0 0.0
        %1322 = vmatpush1.msra.mxu0 0.0
        %1323 = vmatprep.subr.mxu0 0.0
        %1324 = vmatpush1.msra.mxu0 0.0
        %1325 = vmatprep.subr.mxu0 0.0
        %1326 = vmatpush1.msra.mxu0 0.0
        %1327 = vmatprep.subr.mxu0 0.0
        %1328 = vmatpush1.msra.mxu0 0.0
        %1329 = vmatprep.subr.mxu0 0.0
        %1330 = vmatpush1.msra.mxu0 0.0
        %1331 = vmatprep.subr.mxu0 0.0
        %1332 = vmatpush1.msra.mxu0 0.0
        %1333 = vmatprep.subr.mxu0 0.0
        %1334 = vmatpush1.msra.mxu0 0.0
        %1335 = vmatprep.subr.mxu0 0.0
        %1336 = vmatpush1.msra.mxu0 0.0
        %1337 = vmatprep.mubr.f32.mxu0 0.0
        %1338 = vmatmul.mubr.f32.gmra.mrb[0].mxu0 %v1265
        %v1339 = vpop.f32.mrb[0].mxu0
        %v1340 = vadd.f32 0.0, %v1339
        %v1341 = vpop.f32.mrb[0].mxu0
        %v1342 = vadd.f32 0.0, %v1341
        %1343 = vdwg.mxu0
        %1344 = vmatprep.subr.mxu0 0.0
        %1345 = vmatpush1.msra.mxu0 %v1271
        %1346 = vmatprep.subr.mxu0 0.0
        %1347 = vmatpush1.msra.mxu0 0.0
        %1348 = vmatprep.subr.mxu0 0.0
        %1349 = vmatpush1.msra.mxu0 0.0
        %1350 = vmatprep.subr.mxu0 0.0
        %1351 = vmatpush1.msra.mxu0 0.0
        %1352 = vmatprep.subr.mxu0 0.0
        %1353 = vmatpush1.msra.mxu0 0.0
        %1354 = vmatprep.subr.mxu0 0.0
        %1355 = vmatpush1.msra.mxu0 0.0
        %1356 = vmatprep.subr.mxu0 0.0
        %1357 = vmatpush1.msra.mxu0 0.0
        %1358 = vmatprep.subr.mxu0 0.0
        %1359 = vmatpush1.msra.mxu0 0.0
        %1360 = vmatprep.subr.mxu0 0.0
        %1361 = vmatpush1.msra.mxu0 0.0
        %1362 = vmatprep.subr.mxu0 0.0
        %1363 = vmatpush1.msra.mxu0 0.0
        %1364 = vmatprep.subr.mxu0 0.0
        %1365 = vmatpush1.msra.mxu0 0.0
        %1366 = vmatprep.subr.mxu0 0.0
        %1367 = vmatpush1.msra.mxu0 0.0
        %1368 = vmatprep.subr.mxu0 0.0
        %1369 = vmatpush1.msra.mxu0 0.0
        %1370 = vmatprep.subr.mxu0 0.0
        %1371 = vmatpush1.msra.mxu0 0.0
        %1372 = vmatprep.subr.mxu0 0.0
        %1373 = vmatpush1.msra.mxu0 0.0
        %1374 = vmatprep.subr.mxu0 0.0
        %1375 = vmatpush1.msra.mxu0 0.0
        %1376 = vmatprep.subr.mxu0 0.0
        %1377 = vmatpush1.msra.mxu0 0.0
        %1378 = vmatprep.subr.mxu0 0.0
        %1379 = vmatpush1.msra.mxu0 0.0
        %1380 = vmatprep.subr.mxu0 0.0
        %1381 = vmatpush1.msra.mxu0 0.0
        %1382 = vmatprep.subr.mxu0 0.0
        %1383 = vmatpush1.msra.mxu0 0.0
        %1384 = vmatprep.subr.mxu0 0.0
        %1385 = vmatpush1.msra.mxu0 0.0
        %1386 = vmatprep.subr.mxu0 0.0
        %1387 = vmatpush1.msra.mxu0 0.0
        %1388 = vmatprep.subr.mxu0 0.0
        %1389 = vmatpush1.msra.mxu0 0.0
        %1390 = vmatprep.subr.mxu0 0.0
        %1391 = vmatpush1.msra.mxu0 0.0
        %1392 = vmatprep.subr.mxu0 0.0
        %1393 = vmatpush1.msra.mxu0 0.0
        %1394 = vmatprep.subr.mxu0 0.0
        %1395 = vmatpush1.msra.mxu0 0.0
        %1396 = vmatprep.subr.mxu0 0.0
        %1397 = vmatpush1.msra.mxu0 0.0
        %1398 = vmatprep.subr.mxu0 0.0
        %1399 = vmatpush1.msra.mxu0 0.0
        %1400 = vmatprep.subr.mxu0 0.0
        %1401 = vmatpush1.msra.mxu0 0.0
        %1402 = vmatprep.subr.mxu0 0.0
        %1403 = vmatpush1.msra.mxu0 0.0
        %1404 = vmatprep.subr.mxu0 0.0
        %1405 = vmatpush1.msra.mxu0 0.0
        %1406 = vmatprep.subr.mxu0 0.0
        %1407 = vmatpush1.msra.mxu0 0.0
        %1408 = vmatprep.mubr.f32.mxu0 0.0
        %1409 = vmatmul.mubr.f32.gmra.mrb[0].mxu0 %v1265
        %v1410 = vpop.f32.mrb[0].mxu0
        %v1411 = vadd.f32 0.0, %v1410
        %v1412 = vpop.f32.mrb[0].mxu0
        %1413 = vdwg.mxu0
        %v1414 = vadd.f32 %v1241, %v1340
        %v1415 = vadd.f32 %v1242, %v1342
        %v1416 = vadd.f32 %v1243, %v1411
        %v1417 = vld [vmem:[%s203] sm:$0xff]
        %v1418 = vld [vmem:[%s203 + $0x8] sm:$0xff]
        %s1419 = scalar_lea.vmem %s207, 56
        %v1420 = vld [vmem:[%s1419] sm:$0xff]
        %v1423 = vcombine.high %v1417, %v1417
        %v1424 = vcombine.high %v1418, %v1418
        %1425 = vrot.lane.b32.xlu0 %v1417, 91
        %v1426 = vpop.permute.xlu0 %1425
        %1427 = vrot.lane.b32.xlu0 %v1423, 91
        %v1428 = vpop.permute.xlu0 %1427
        %1429 = vrot.lane.b32.xlu0 %v1418, 91
        %v1430 = vpop.permute.xlu0 %1429
        %1431 = vrot.lane.b32.xlu0 %v1424, 91
        %v1432 = vpop.permute.xlu0 %1431
        %vm1433 = vcmask 744448
        %v1434 = vsel %vm1433, %v1426, %v1428
        %v1435 = vsel %vm1433, %v1428, %v1430
        %v1436 = vsel %vm1433, %v1430, %v1432
        %v1438 = vsel %vm224, %v1420, 0
        %v1440 = vsel %vm228, %v1434, 0
        %v1442 = vsel %vm228, %v1435, 0
        %v1444 = vsel %vm228, %v1436, 0
        %1446 = vmatprep.subr.mxu0 %v1442
        %1447 = vmatpush1.msra.mxu0 %v1440
        %1448 = vmatprep.subr.mxu0 0.0
        %1449 = vmatpush1.msra.mxu0 0.0
        %1450 = vmatprep.subr.mxu0 0.0
        %1451 = vmatpush1.msra.mxu0 0.0
        %1452 = vmatprep.subr.mxu0 0.0
        %1453 = vmatpush1.msra.mxu0 0.0
        %1454 = vmatprep.subr.mxu0 0.0
        %1455 = vmatpush1.msra.mxu0 0.0
        %1456 = vmatprep.subr.mxu0 0.0
        %1457 = vmatpush1.msra.mxu0 0.0
        %1458 = vmatprep.subr.mxu0 0.0
        %1459 = vmatpush1.msra.mxu0 0.0
        %1460 = vmatprep.subr.mxu0 0.0
        %1461 = vmatpush1.msra.mxu0 0.0
        %1462 = vmatprep.subr.mxu0 0.0
        %1463 = vmatpush1.msra.mxu0 0.0
        %1464 = vmatprep.subr.mxu0 0.0
        %1465 = vmatpush1.msra.mxu0 0.0
        %1466 = vmatprep.subr.mxu0 0.0
        %1467 = vmatpush1.msra.mxu0 0.0
        %1468 = vmatprep.subr.mxu0 0.0
        %1469 = vmatpush1.msra.mxu0 0.0
        %1470 = vmatprep.subr.mxu0 0.0
        %1471 = vmatpush1.msra.mxu0 0.0
        %1472 = vmatprep.subr.mxu0 0.0
        %1473 = vmatpush1.msra.mxu0 0.0
        %1474 = vmatprep.subr.mxu0 0.0
        %1475 = vmatpush1.msra.mxu0 0.0
        %1476 = vmatprep.subr.mxu0 0.0
        %1477 = vmatpush1.msra.mxu0 0.0
        %1478 = vmatprep.subr.mxu0 0.0
        %1479 = vmatpush1.msra.mxu0 0.0
        %1480 = vmatprep.subr.mxu0 0.0
        %1481 = vmatpush1.msra.mxu0 0.0
        %1482 = vmatprep.subr.mxu0 0.0
        %1483 = vmatpush1.msra.mxu0 0.0
        %1484 = vmatprep.subr.mxu0 0.0
        %1485 = vmatpush1.msra.mxu0 0.0
        %1486 = vmatprep.subr.mxu0 0.0
        %1487 = vmatpush1.msra.mxu0 0.0
        %1488 = vmatprep.subr.mxu0 0.0
        %1489 = vmatpush1.msra.mxu0 0.0
        %1490 = vmatprep.subr.mxu0 0.0
        %1491 = vmatpush1.msra.mxu0 0.0
        %1492 = vmatprep.subr.mxu0 0.0
        %1493 = vmatpush1.msra.mxu0 0.0
        %1494 = vmatprep.subr.mxu0 0.0
        %1495 = vmatpush1.msra.mxu0 0.0
        %1496 = vmatprep.subr.mxu0 0.0
        %1497 = vmatpush1.msra.mxu0 0.0
        %1498 = vmatprep.subr.mxu0 0.0
        %1499 = vmatpush1.msra.mxu0 0.0
        %1500 = vmatprep.subr.mxu0 0.0
        %1501 = vmatpush1.msra.mxu0 0.0
        %1502 = vmatprep.subr.mxu0 0.0
        %1503 = vmatpush1.msra.mxu0 0.0
        %1504 = vmatprep.subr.mxu0 0.0
        %1505 = vmatpush1.msra.mxu0 0.0
        %1506 = vmatprep.subr.mxu0 0.0
        %1507 = vmatpush1.msra.mxu0 0.0
        %1508 = vmatprep.subr.mxu0 0.0
        %1509 = vmatpush1.msra.mxu0 0.0
        %1510 = vmatprep.mubr.f32.mxu0 0.0
        %1511 = vmatmul.mubr.f32.gmra.mrb[0].mxu0 %v1438
        %v1512 = vpop.f32.mrb[0].mxu0
        %v1513 = vadd.f32 0.0, %v1512
        %v1514 = vpop.f32.mrb[0].mxu0
        %v1515 = vadd.f32 0.0, %v1514
        %1516 = vdwg.mxu0
        %1517 = vmatprep.subr.mxu0 0.0
        %1518 = vmatpush1.msra.mxu0 %v1444
        %1519 = vmatprep.subr.mxu0 0.0
        %1520 = vmatpush1.msra.mxu0 0.0
        %1521 = vmatprep.subr.mxu0 0.0
        %1522 = vmatpush1.msra.mxu0 0.0
        %1523 = vmatprep.subr.mxu0 0.0
        %1524 = vmatpush1.msra.mxu0 0.0
        %1525 = vmatprep.subr.mxu0 0.0
        %1526 = vmatpush1.msra.mxu0 0.0
        %1527 = vmatprep.subr.mxu0 0.0
        %1528 = vmatpush1.msra.mxu0 0.0
        %1529 = vmatprep.subr.mxu0 0.0
        %1530 = vmatpush1.msra.mxu0 0.0
        %1531 = vmatprep.subr.mxu0 0.0
        %1532 = vmatpush1.msra.mxu0 0.0
        %1533 = vmatprep.subr.mxu0 0.0
        %1534 = vmatpush1.msra.mxu0 0.0
        %1535 = vmatprep.subr.mxu0 0.0
        %1536 = vmatpush1.msra.mxu0 0.0
        %1537 = vmatprep.subr.mxu0 0.0
        %1538 = vmatpush1.msra.mxu0 0.0
        %1539 = vmatprep.subr.mxu0 0.0
        %1540 = vmatpush1.msra.mxu0 0.0
        %1541 = vmatprep.subr.mxu0 0.0
        %1542 = vmatpush1.msra.mxu0 0.0
        %1543 = vmatprep.subr.mxu0 0.0
        %1544 = vmatpush1.msra.mxu0 0.0
        %1545 = vmatprep.subr.mxu0 0.0
        %1546 = vmatpush1.msra.mxu0 0.0
        %1547 = vmatprep.subr.mxu0 0.0
        %1548 = vmatpush1.msra.mxu0 0.0
        %1549 = vmatprep.subr.mxu0 0.0
        %1550 = vmatpush1.msra.mxu0 0.0
        %1551 = vmatprep.subr.mxu0 0.0
        %1552 = vmatpush1.msra.mxu0 0.0
        %1553 = vmatprep.subr.mxu0 0.0
        %1554 = vmatpush1.msra.mxu0 0.0
        %1555 = vmatprep.subr.mxu0 0.0
        %1556 = vmatpush1.msra.mxu0 0.0
        %1557 = vmatprep.subr.mxu0 0.0
        %1558 = vmatpush1.msra.mxu0 0.0
        %1559 = vmatprep.subr.mxu0 0.0
        %1560 = vmatpush1.msra.mxu0 0.0
        %1561 = vmatprep.subr.mxu0 0.0
        %1562 = vmatpush1.msra.mxu0 0.0
        %1563 = vmatprep.subr.mxu0 0.0
        %1564 = vmatpush1.msra.mxu0 0.0
        %1565 = vmatprep.subr.mxu0 0.0
        %1566 = vmatpush1.msra.mxu0 0.0
        %1567 = vmatprep.subr.mxu0 0.0
        %1568 = vmatpush1.msra.mxu0 0.0
        %1569 = vmatprep.subr.mxu0 0.0
        %1570 = vmatpush1.msra.mxu0 0.0
        %1571 = vmatprep.subr.mxu0 0.0
        %1572 = vmatpush1.msra.mxu0 0.0
        %1573 = vmatprep.subr.mxu0 0.0
        %1574 = vmatpush1.msra.mxu0 0.0
        %1575 = vmatprep.subr.mxu0 0.0
        %1576 = vmatpush1.msra.mxu0 0.0
        %1577 = vmatprep.subr.mxu0 0.0
        %1578 = vmatpush1.msra.mxu0 0.0
        %1579 = vmatprep.subr.mxu0 0.0
        %1580 = vmatpush1.msra.mxu0 0.0
        %1581 = vmatprep.mubr.f32.mxu0 0.0
        %1582 = vmatmul.mubr.f32.gmra.mrb[0].mxu0 %v1438
        %v1583 = vpop.f32.mrb[0].mxu0
        %v1584 = vadd.f32 0.0, %v1583
        %v1585 = vpop.f32.mrb[0].mxu0
        %1586 = vdwg.mxu0
        %v1587 = vadd.f32 %v1414, %v1513
        %v1588 = vadd.f32 %v1415, %v1515
        %v1589 = vadd.f32 %v1416, %v1584
        %v1590 = vld [vmem:[%s203] sm:$0xff]
        %v1591 = vld [vmem:[%s203 + $0x8] sm:$0xff]
        %s1592 = scalar_lea.vmem %s207, 64
        %v1593 = vld [vmem:[%s1592] sm:$0xff]
        %v1596 = vcombine.high %v1590, %v1590
        %v1597 = vcombine.high %v1591, %v1591
        %1598 = vrot.lane.b32.xlu0 %v1590, 90
        %v1599 = vpop.permute.xlu0 %1598
        %1600 = vrot.lane.b32.xlu0 %v1596, 90
        %v1601 = vpop.permute.xlu0 %1600
        %1602 = vrot.lane.b32.xlu0 %v1591, 90
        %v1603 = vpop.permute.xlu0 %1602
        %1604 = vrot.lane.b32.xlu0 %v1597, 90
        %v1605 = vpop.permute.xlu0 %1604
        %vm1606 = vcmask 736256
        %v1607 = vsel %vm1606, %v1599, %v1601
        %v1608 = vsel %vm1606, %v1601, %v1603
        %v1609 = vsel %vm1606, %v1603, %v1605
        %v1611 = vsel %vm224, %v1593, 0
        %v1613 = vsel %vm228, %v1607, 0
        %v1615 = vsel %vm228, %v1608, 0
        %v1617 = vsel %vm228, %v1609, 0
        %1619 = vmatprep.subr.mxu0 %v1615
        %1620 = vmatpush1.msra.mxu0 %v1613
        %1621 = vmatprep.subr.mxu0 0.0
        %1622 = vmatpush1.msra.mxu0 0.0
        %1623 = vmatprep.subr.mxu0 0.0
        %1624 = vmatpush1.msra.mxu0 0.0
        %1625 = vmatprep.subr.mxu0 0.0
        %1626 = vmatpush1.msra.mxu0 0.0
        %1627 = vmatprep.subr.mxu0 0.0
        %1628 = vmatpush1.msra.mxu0 0.0
        %1629 = vmatprep.subr.mxu0 0.0
        %1630 = vmatpush1.msra.mxu0 0.0
        %1631 = vmatprep.subr.mxu0 0.0
        %1632 = vmatpush1.msra.mxu0 0.0
        %1633 = vmatprep.subr.mxu0 0.0
        %1634 = vmatpush1.msra.mxu0 0.0
        %1635 = vmatprep.subr.mxu0 0.0
        %1636 = vmatpush1.msra.mxu0 0.0
        %1637 = vmatprep.subr.mxu0 0.0
        %1638 = vmatpush1.msra.mxu0 0.0
        %1639 = vmatprep.subr.mxu0 0.0
        %1640 = vmatpush1.msra.mxu0 0.0
        %1641 = vmatprep.subr.mxu0 0.0
        %1642 = vmatpush1.msra.mxu0 0.0
        %1643 = vmatprep.subr.mxu0 0.0
        %1644 = vmatpush1.msra.mxu0 0.0
        %1645 = vmatprep.subr.mxu0 0.0
        %1646 = vmatpush1.msra.mxu0 0.0
        %1647 = vmatprep.subr.mxu0 0.0
        %1648 = vmatpush1.msra.mxu0 0.0
        %1649 = vmatprep.subr.mxu0 0.0
        %1650 = vmatpush1.msra.mxu0 0.0
        %1651 = vmatprep.subr.mxu0 0.0
        %1652 = vmatpush1.msra.mxu0 0.0
        %1653 = vmatprep.subr.mxu0 0.0
        %1654 = vmatpush1.msra.mxu0 0.0
        %1655 = vmatprep.subr.mxu0 0.0
        %1656 = vmatpush1.msra.mxu0 0.0
        %1657 = vmatprep.subr.mxu0 0.0
        %1658 = vmatpush1.msra.mxu0 0.0
        %1659 = vmatprep.subr.mxu0 0.0
        %1660 = vmatpush1.msra.mxu0 0.0
        %1661 = vmatprep.subr.mxu0 0.0
        %1662 = vmatpush1.msra.mxu0 0.0
        %1663 = vmatprep.subr.mxu0 0.0
        %1664 = vmatpush1.msra.mxu0 0.0
        %1665 = vmatprep.subr.mxu0 0.0
        %1666 = vmatpush1.msra.mxu0 0.0
        %1667 = vmatprep.subr.mxu0 0.0
        %1668 = vmatpush1.msra.mxu0 0.0
        %1669 = vmatprep.subr.mxu0 0.0
        %1670 = vmatpush1.msra.mxu0 0.0
        %1671 = vmatprep.subr.mxu0 0.0
        %1672 = vmatpush1.msra.mxu0 0.0
        %1673 = vmatprep.subr.mxu0 0.0
        %1674 = vmatpush1.msra.mxu0 0.0
        %1675 = vmatprep.subr.mxu0 0.0
        %1676 = vmatpush1.msra.mxu0 0.0
        %1677 = vmatprep.subr.mxu0 0.0
        %1678 = vmatpush1.msra.mxu0 0.0
        %1679 = vmatprep.subr.mxu0 0.0
        %1680 = vmatpush1.msra.mxu0 0.0
        %1681 = vmatprep.subr.mxu0 0.0
        %1682 = vmatpush1.msra.mxu0 0.0
        %1683 = vmatprep.mubr.f32.mxu0 0.0
        %1684 = vmatmul.mubr.f32.gmra.mrb[0].mxu0 %v1611
        %v1685 = vpop.f32.mrb[0].mxu0
        %v1686 = vadd.f32 0.0, %v1685
        %v1687 = vpop.f32.mrb[0].mxu0
        %v1688 = vadd.f32 0.0, %v1687
        %1689 = vdwg.mxu0
        %1690 = vmatprep.subr.mxu0 0.0
        %1691 = vmatpush1.msra.mxu0 %v1617
        %1692 = vmatprep.subr.mxu0 0.0
        %1693 = vmatpush1.msra.mxu0 0.0
        %1694 = vmatprep.subr.mxu0 0.0
        %1695 = vmatpush1.msra.mxu0 0.0
        %1696 = vmatprep.subr.mxu0 0.0
        %1697 = vmatpush1.msra.mxu0 0.0
        %1698 = vmatprep.subr.mxu0 0.0
        %1699 = vmatpush1.msra.mxu0 0.0
        %1700 = vmatprep.subr.mxu0 0.0
        %1701 = vmatpush1.msra.mxu0 0.0
        %1702 = vmatprep.subr.mxu0 0.0
        %1703 = vmatpush1.msra.mxu0 0.0
        %1704 = vmatprep.subr.mxu0 0.0
        %1705 = vmatpush1.msra.mxu0 0.0
        %1706 = vmatprep.subr.mxu0 0.0
        %1707 = vmatpush1.msra.mxu0 0.0
        %1708 = vmatprep.subr.mxu0 0.0
        %1709 = vmatpush1.msra.mxu0 0.0
        %1710 = vmatprep.subr.mxu0 0.0
        %1711 = vmatpush1.msra.mxu0 0.0
        %1712 = vmatprep.subr.mxu0 0.0
        %1713 = vmatpush1.msra.mxu0 0.0
        %1714 = vmatprep.subr.mxu0 0.0
        %1715 = vmatpush1.msra.mxu0 0.0
        %1716 = vmatprep.subr.mxu0 0.0
        %1717 = vmatpush1.msra.mxu0 0.0
        %1718 = vmatprep.subr.mxu0 0.0
        %1719 = vmatpush1.msra.mxu0 0.0
        %1720 = vmatprep.subr.mxu0 0.0
        %1721 = vmatpush1.msra.mxu0 0.0
        %1722 = vmatprep.subr.mxu0 0.0
        %1723 = vmatpush1.msra.mxu0 0.0
        %1724 = vmatprep.subr.mxu0 0.0
        %1725 = vmatpush1.msra.mxu0 0.0
        %1726 = vmatprep.subr.mxu0 0.0
        %1727 = vmatpush1.msra.mxu0 0.0
        %1728 = vmatprep.subr.mxu0 0.0
        %1729 = vmatpush1.msra.mxu0 0.0
        %1730 = vmatprep.subr.mxu0 0.0
        %1731 = vmatpush1.msra.mxu0 0.0
        %1732 = vmatprep.subr.mxu0 0.0
        %1733 = vmatpush1.msra.mxu0 0.0
        %1734 = vmatprep.subr.mxu0 0.0
        %1735 = vmatpush1.msra.mxu0 0.0
        %1736 = vmatprep.subr.mxu0 0.0
        %1737 = vmatpush1.msra.mxu0 0.0
        %1738 = vmatprep.subr.mxu0 0.0
        %1739 = vmatpush1.msra.mxu0 0.0
        %1740 = vmatprep.subr.mxu0 0.0
        %1741 = vmatpush1.msra.mxu0 0.0
        %1742 = vmatprep.subr.mxu0 0.0
        %1743 = vmatpush1.msra.mxu0 0.0
        %1744 = vmatprep.subr.mxu0 0.0
        %1745 = vmatpush1.msra.mxu0 0.0
        %1746 = vmatprep.subr.mxu0 0.0
        %1747 = vmatpush1.msra.mxu0 0.0
        %1748 = vmatprep.subr.mxu0 0.0
        %1749 = vmatpush1.msra.mxu0 0.0
        %1750 = vmatprep.subr.mxu0 0.0
        %1751 = vmatpush1.msra.mxu0 0.0
        %1752 = vmatprep.subr.mxu0 0.0
        %1753 = vmatpush1.msra.mxu0 0.0
        %1754 = vmatprep.mubr.f32.mxu0 0.0
        %1755 = vmatmul.mubr.f32.gmra.mrb[0].mxu0 %v1611
        %v1756 = vpop.f32.mrb[0].mxu0
        %v1757 = vadd.f32 0.0, %v1756
        %v1758 = vpop.f32.mrb[0].mxu0
        %1759 = vdwg.mxu0
        %v1760 = vadd.f32 %v1587, %v1686
        %v1761 = vadd.f32 %v1588, %v1688
        %v1762 = vadd.f32 %v1589, %v1757
        %p1763 = scmp.ne.s32.totalorder %s23, 0
        // Predicated region
        $region33: #{tpu_custom_call.1} parent=27 // pred_check
          %p1764 = pneg %p1763
        $region34: #{tpu_custom_call.1} parent=27 // pred_check_branch
          %1766 = sbr.rel (%p1764) target = $region36
        $region35: #{tpu_custom_call.1} parent=27 // pred_region
          %1767 = vst [vmem:[#allocation2] sm:$0xff] %v1760
          %1768 = vst [vmem:[#allocation2 + $0x8] sm:$0xff] %v1761
          %1769 = vst [vmem:[#allocation2 + $0x10] sm:$0xff] %v1762
        $region36: #{tpu_custom_call.1} parent=27 // pred_fallthru
          _
        // Predicated region
        $region37: #{tpu_custom_call.1} parent=27 // pred_check
          %p1770 = pneg %p208
        $region38: #{tpu_custom_call.1} parent=27 // pred_check_branch
          %1772 = sbr.rel (%p1770) target = $region40
        $region39: #{tpu_custom_call.1} parent=27 // pred_region
          %v1773 = vmax.f32 %v1760, 0.0
          %v1774 = vmax.f32 %v1761, 0.0
          %v1775 = vmax.f32 %v1762, 0.0
          %1776 = vst [vmem:[%s190] sm:$0xff] %v1773
          %1777 = vst [vmem:[%s190 + $0x8] sm:$0xff] %v1774
          %1778 = vst [vmem:[%s190 + $0x10] sm:$0xff] %v1775
        $region40: #{tpu_custom_call.1} parent=27 // pred_fallthru
          _
        %s1779 = sand.u32 %s101, 1
        %s1780 = scalar_lea.sflag [#allocation4], %s1779
        %s1781 = sand.u32 %s101, 1
        %s1782 = smul.addr %s1781, 24
        %s1783 = scalar_lea.vmem [#allocation3], %s1782
        // Predicated region
        $region41: #{tpu_custom_call.1} parent=27 // pred_check
          %p1784 = pneg %p111
        $region42: #{tpu_custom_call.1} parent=27 // pred_check_branch
          %1786 = sbr.rel (%p1784) target = $region44
        $region43: #{tpu_custom_call.1} parent=27 // pred_region
          %s1788 = ssub.s32 384, 384
          %1789 = vsyncadd %s1780, %s1788
          %s1790 = smul.addr %s22, 3
          %s1791 = smul.addr %s21, 3
          %s1792 = sadd.s32 %s1790, %s1791
          %s1793 = smul.addr %s1792, 128
          %s1794 = scalar_lea.hbm %s2, %s1793
          %s1796 = sshll.u32 %s1783, 4
          %s1797 = int_to_ptr.vmem [resolvable:$true] %s1796
          %1799 = dma.vmem_to_hbm [thread:$0]  %s1797, 384, %s1794, %s1780
        $region44: #{tpu_custom_call.1} parent=27 // pred_fallthru
          _
      $region28: #{tpu_custom_call.1} parent=5 // pred_fallthru
        _
      %p1800 = scmp.le.s32.totalorder 2, %s11
      // Predicated region
      $region45: #{tpu_custom_call.1} parent=5 // pred_check
        %p1801 = pneg %p1800
      $region46: #{tpu_custom_call.1} parent=5 // pred_check_branch
        %1803 = sbr.rel (%p1801) target = $region48
      $region47: #{tpu_custom_call.1} parent=5 // pred_region
        %s1804 = ssub.s32 %s11, 2
        // Predicated region
        $region49: #{tpu_custom_call.1} parent=47 // pred_check
          %p1805 = pneg %p117
        $region50: #{tpu_custom_call.1} parent=47 // pred_check_branch
          %1807 = sbr.rel (%p1805) target = $region52
        $region51: #{tpu_custom_call.1} parent=47 // pred_region
          %s1808 = sand.u32 %s102, 1
          %s1809 = scalar_lea.sflag [#allocation4], %s1808
          %s1810 = sand.u32 %s102, 1
          %s1811 = smul.addr %s1810, 24
          %s1812 = scalar_lea.vmem [#allocation3], %s1811
          %1813 = dma.done %s1809, 384
        $region52: #{tpu_custom_call.1} parent=47 // pred_fallthru
          _
      $region48: #{tpu_custom_call.1} parent=5 // pred_fallthru
        _
    $region6: #{tpu_custom_call.1} parent=1 // loop_footer
      %s15 = sadd.s32 1, %s11
    $region7: #{tpu_custom_call.1} parent=1 // loop_footer_branch
      %10 = sbr.rel target = $region3
    $region8: #{tpu_custom_call.1} parent=1 // loop_exit
      _
    %1814 = vsyncpa [#allocation4], 1
    %s1815 = scalar_lea.sflag [#allocation4], 1
    %1816 = vsyncpa %s1815, 1

</llo_original>
